<compile_context>
chip_gen: v7x
topology: tpu7x:2x2x1
jax: 0.10.0
libtpu: 0.0.40
codegen_flags: <defaults>
</compile_context>

<pallas_src>
import math

import jax
import jax.numpy as jnp
from jax.experimental import pallas as pl
from jax.experimental.pallas import tpu as pltpu


def _round_up(x, m):
    return (x + m - 1) // m * m


def _build_row_weight(w_oihw, s_col):
    """Structured weight for the per-output-row matmul formulation.

    Maps an LHS lane window laid out as (dp, q, cin) -- the three input rows
    p = 2r-1+dp flattened (column q, then channel) -- to one output row laid out
    as (oq, cout).  Column taps, stride-2 and column padding are baked in as
    zeros.  The kernel computes in a spatially-transposed layout (rows = W axis,
    cols = H axis), so kw pairs with dp and kh with dq.
    """
    cout, cin = w_oihw.shape[0], w_oihw.shape[1]
    o_col = s_col // 2
    q = jnp.arange(s_col)
    oq = jnp.arange(o_col)
    dq = q[:, None] - 2 * oq[None, :] + 1                  # (s_col, o_col)
    valid = (dq >= 0) & (dq < 3)
    dqc = jnp.clip(dq, 0, 2)
    w_t = jnp.transpose(w_oihw, (3, 2, 1, 0))              # (kw=dp, kh=dq, cin, cout)
    wsel = w_t[:, dqc, :, :]                               # (dp, q, oq, cin, cout)
    wsel = jnp.where(valid[None, :, :, None, None], wsel, 0.0)
    wmat = jnp.transpose(wsel, (0, 1, 3, 2, 4))            # (dp, q, cin, oq, cout)
    return wmat.reshape(3 * s_col * cin, o_col * cout)


def _make_kernel(dims, nf, sf):
    """dims: list of (s_row, s_col, cin, cout) per conv layer (static)."""

    def elu(y):
        return jnp.where(y > 0.0, y, jnp.exp(jnp.minimum(y, 0.0)) - 1.0)

    def kernel(x_ref, w1_ref, b1_ref, w2_ref, b2_ref, w3_ref, b3_ref, w4_ref,
               b4_ref, o_ref, buf2, buf3, buf4):
        w_refs = (w1_ref, w2_ref, w3_ref, w4_ref)
        b_refs = (b1_ref, b2_ref, b3_ref, b4_ref)

        # Weights / biases are VMEM-resident; load (and broadcast biases) once
        # per grid step, reuse across every sub-block / output row.
        w_full, w_low, b_bc = [], [], []
        for l, (wr, br) in enumerate(zip(w_refs, b_refs)):
            _, s_col, cin, cout = dims[l]
            kb = s_col * cin
            n_out = (s_col // 2) * cout
            w_full.append(wr[...])
            w_low.append(wr[kb:, :])      # r == 0 drops the p = -1 (zero pad) row
            b_bc.append(jnp.broadcast_to(br[...], (sf, n_out)))

        def run_layer(l, read_in, write_out):
            s_row, s_col, cin, cout = dims[l]
            kb = s_col * cin
            n_out = (s_col // 2) * cout
            for r in range(s_row // 2):
                if r == 0:
                    lhs = read_in(0, 2 * kb)                         # rows 0, 1
                    rhs = w_low[l]
                else:
                    lhs = read_in((2 * r - 1) * kb, 3 * kb)          # rows 2r-1..2r+1
                    rhs = w_full[l]
                y = jnp.dot(lhs, rhs, preferred_element_type=jnp.float32)
                y = elu(y + b_bc[l])
                write_out(r, y, n_out)

        for j in range(nf // sf):                 # static sub-block loop
            r0 = j * sf

            # --- layer 1: ingest the raw (byte-reinterpreted) uint8 frame ----
            xi = x_ref[r0:r0 + sf, :].astype(jnp.float32)     # int8 view of uint8
            xi = jnp.where(xi < 0.0, xi + 256.0, xi) * (1.0 / 255.0)
            xin = xi.astype(jnp.bfloat16)                     # (sf, W*H*C)

            def read_l1(start, width):
                return xin[:, start:start + width]

            def make_read(buf):
                def read(start, width):
                    return buf[:, start:start + width]
                return read

            def make_write(buf):
                def write(r, y, n_out):
                    buf[:, r * n_out:(r + 1) * n_out] = y.astype(jnp.bfloat16)
                return write

            def write_final(r, y, n_out):
                o_ref[r0:r0 + sf, :] = y.astype(o_ref.dtype)

            run_layer(0, read_l1, make_write(buf2))
            run_layer(1, make_read(buf2), make_write(buf3))
            run_layer(2, make_read(buf3), make_write(buf4))
            run_layer(3, make_read(buf4), write_final)

    return kernel


def mario_doom_state_embedding(inputs, params):
    """inputs: (T, B, C, W, H) uint8.  params: list of 4 (w_oihw, bias) tuples."""
    t, b_, c, w_dim, h_dim = inputs.shape
    n = t * b_

    # --- PyTorch forward glue: the torch .reshape is a raw reinterpretation of
    # the frame bytes, so the kernel just consumes each frame's 1-D byte vector
    # and interprets lane index as (w, h, c) row-major. bitcast u8->i8 is free.
    x_flat = inputs.reshape(n, c * w_dim * h_dim)
    x_flat = jax.lax.bitcast_convert_type(x_flat, jnp.int8)

    # --- static layer geometry ------------------------------------------------
    dims = []
    s_row, s_col, cin = w_dim, h_dim, c
    for w_l, _ in params:
        cout = w_l.shape[0]
        assert s_row % 2 == 0 and s_col % 2 == 0, "even spatial sizes required"
        dims.append((s_row, s_col, cin, cout))
        s_row, s_col, cin = s_row // 2, s_col // 2, cout
    # TODO(synk): generalise the final store for inputs whose 4-layer output is
    # larger than 1x1 (needs NCHW-order flattening of the final feature map).
    assert s_row == 1 and s_col == 1, "kernel assumes the net reduces frames to 1x1"
    emb_dim = cin  # == 32

    # --- structured weights (bf16 MXU operands) + per-row tiled biases (f32) ---
    w_mats, b_rows = [], []
    for (w_l, b_l), (_, sc, _, _) in zip(params, dims):
        w_mats.append(
            _build_row_weight(w_l.astype(jnp.float32), sc).astype(jnp.bfloat16))
        b_rows.append(jnp.tile(b_l.astype(jnp.float32), sc // 2).reshape(1, -1))

    # --- frame tiling: big tiles to amortise per-step overhead; keep >=2 grid
    # steps when N is large so the 'parallel' axis can use both v7x TensorCores.
    if n <= 32:
        nf = _round_up(n, 8)
    else:
        nf = max(32, min(256, _round_up((n + 1) // 2, 32)))
    n_pad = _round_up(n, nf)
    if n_pad != n:
        x_flat = jnp.pad(x_flat, ((0, n_pad - n), (0, 0)))
    sf = 32 if nf % 32 == 0 else (16 if nf % 16 == 0 else 8)
    grid = (n_pad // nf,)

    kernel = _make_kernel(dims, nf, sf)

    in_specs = [pl.BlockSpec((nf, x_flat.shape[1]), lambda i: (i, 0))]
    operands = [x_flat]
    for w_m, b_r in zip(w_mats, b_rows):
        in_specs.append(pl.BlockSpec(w_m.shape, lambda i: (0, 0)))   # resident
        in_specs.append(pl.BlockSpec(b_r.shape, lambda i: (0, 0)))   # resident
        operands.append(w_m)
        operands.append(b_r)

    # Inter-layer activations for one sub-block (layers 2..4 inputs), bf16.
    scratch_shapes = [
        pltpu.VMEM((sf, dims[l][0] * dims[l][1] * dims[l][2]), jnp.bfloat16)
        for l in (1, 2, 3)
    ]

    flops_pf, transc_pf = 0, 0
    for (sr, sc, ci, co) in dims:
        kb, n_out, o_row = sc * ci, (sc // 2) * co, sr // 2
        flops_pf += 2 * n_out * (2 * kb + max(o_row - 1, 0) * 3 * kb)
        transc_pf += o_row * n_out
    cost = pl.CostEstimate(
        flops=int(flops_pf) * int(n_pad),
        transcendentals=int(transc_pf) * int(n_pad),
        bytes_accessed=int(x_flat.size) + sum(int(w.size) * 2 for w in w_mats)
        + sum(int(b.size) * 4 for b in b_rows) + int(n_pad) * emb_dim * 4)

    out = pl.pallas_call(
        kernel,
        out_shape=jax.ShapeDtypeStruct((n_pad, emb_dim), jnp.float32),
        grid=grid,
        in_specs=in_specs,
        out_specs=pl.BlockSpec((nf, emb_dim), lambda i: (i, 0)),
        scratch_shapes=scratch_shapes,
        compiler_params=pltpu.CompilerParams(
            dimension_semantics=("parallel",),
            vmem_limit_bytes=32 * 1024 * 1024),
        cost_estimate=cost,
    )(*operands)

    return out[:n].reshape(t, b_, emb_dim)


def mario_doom_state_embedding_reference(inputs, params):
    """Pure-JAX reference replicating the PyTorch module exactly (f32)."""
    t, b_, c, w_dim, h_dim = inputs.shape
    x = inputs.reshape(t, b_, w_dim, h_dim, c).reshape(t * b_, w_dim, h_dim, c)
    x = x.astype(jnp.float32) / 255.0
    x = jnp.transpose(x, (0, 3, 2, 1))                  # torch .transpose(1,3) -> NCHW
    for w_l, b_l in params:
        x = jax.lax.conv_general_dilated(
            x, w_l, window_strides=(2, 2), padding=((1, 1), (1, 1)),
            dimension_numbers=("NCHW", "OIHW", "NCHW"),
            precision=jax.lax.Precision.HIGHEST)
        x = x + b_l[None, :, None, None]
        x = jax.nn.elu(x)
    return x.reshape(t, b_, -1)


def init_params(in_channels, key):
    """Orthogonal weights with relu gain (like the PyTorch init); small nonzero
    biases so the bias path is exercised (the module itself inits biases to 0)."""
    gain = math.sqrt(2.0)
    ortho = jax.nn.initializers.orthogonal(scale=gain)
    params = []
    cin = in_channels
    for _ in range(4):
        key, kw, kb = jax.random.split(key, 3)
        cout = 32
        w = ortho(kw, (cout, cin * 9), jnp.float32).reshape(cout, cin, 3, 3)  # OIHW
        b = 0.01 * jax.random.normal(kb, (cout,), jnp.float32)
        params.append((w, b))
        cin = cout
    return params


if __name__ == "__main__":
    # Small shapes consistent with the module: spatial 16 -> 8 -> 4 -> 2 -> 1.
    T, B, C, W, H = 4, 2, 4, 16, 16
    key = jax.random.PRNGKey(0)
    k_x, k_p = jax.random.split(key)
    inputs = jax.random.randint(k_x, (T, B, C, W, H), 0, 256,
                                dtype=jnp.int32).astype(jnp.uint8)
    params = init_params(C, k_p)

    emb = jax.jit(mario_doom_state_embedding)(inputs, params)
    emb = jax.block_until_ready(emb)

    ref = mario_doom_state_embedding_reference(inputs, params)
    assert emb.shape == (T, B, 32), emb.shape
    err = float(jnp.max(jnp.abs(emb - ref)))
    # bf16 MXU operands vs an f32 HIGHEST-precision reference -> ~1e-2 agreement.
    assert jnp.allclose(emb, ref, atol=4e-2, rtol=4e-2), err
    print("KERNEL_OK")
</pallas_src>

<mosaic_0001>
module attributes {stable_mosaic.version = 11 : i64} {
  func.func @kernel(%arg0: i32, %arg1: memref<8x1024xi8, #tpu.memory_space<vmem>>, %arg2: memref<192x256xbf16, #tpu.memory_space<vmem>>, %arg3: memref<1x256xf32, #tpu.memory_space<vmem>>, %arg4: memref<768x128xbf16, #tpu.memory_space<vmem>>, %arg5: memref<1x128xf32, #tpu.memory_space<vmem>>, %arg6: memref<384x64xbf16, #tpu.memory_space<vmem>>, %arg7: memref<1x64xf32, #tpu.memory_space<vmem>>, %arg8: memref<192x32xbf16, #tpu.memory_space<vmem>>, %arg9: memref<1x32xf32, #tpu.memory_space<vmem>>, %arg10: memref<8x32xf32, #tpu.memory_space<vmem>>, %arg11: memref<8x2048xbf16, #tpu.memory_space<vmem>>, %arg12: memref<8x512xbf16, #tpu.memory_space<vmem>>, %arg13: memref<8x128xbf16, #tpu.memory_space<vmem>>) attributes {dimension_semantics = [#tpu.dimension_semantics<parallel>], iteration_bounds = array<i64: 1>, scalar_prefetch = 0 : i64, scratch_operands = 3 : i64, tpu.core_type = #tpu.core_type<tc>, window_params = [{transform_indices = @transform_0, window_bounds = array<i64: 8, 1024>}, {pipeline_mode = #tpu.pipeline_mode<synchronous>, transform_indices = @transform_1, window_bounds = array<i64: 192, 256>}, {pipeline_mode = #tpu.pipeline_mode<synchronous>, transform_indices = @transform_2, window_bounds = array<i64: 1, 256>}, {pipeline_mode = #tpu.pipeline_mode<synchronous>, transform_indices = @transform_3, window_bounds = array<i64: 768, 128>}, {pipeline_mode = #tpu.pipeline_mode<synchronous>, transform_indices = @transform_4, window_bounds = array<i64: 1, 128>}, {pipeline_mode = #tpu.pipeline_mode<synchronous>, transform_indices = @transform_5, window_bounds = array<i64: 384, 64>}, {pipeline_mode = #tpu.pipeline_mode<synchronous>, transform_indices = @transform_6, window_bounds = array<i64: 1, 64>}, {pipeline_mode = #tpu.pipeline_mode<synchronous>, transform_indices = @transform_7, window_bounds = array<i64: 192, 32>}, {pipeline_mode = #tpu.pipeline_mode<synchronous>, transform_indices = @transform_8, window_bounds = array<i64: 1, 32>}, {transform_indices = @transform_9, window_bounds = array<i64: 8, 32>}]} {
    %c0 = arith.constant 0 : index
    %c0_0 = arith.constant 0 : index
    %0 = vector.load %arg2[%c0, %c0_0] : memref<192x256xbf16, #tpu.memory_space<vmem>>, vector<192x256xbf16>
    %c64 = arith.constant 64 : index
    %c0_1 = arith.constant 0 : index
    %1 = vector.load %arg2[%c64, %c0_1] : memref<192x256xbf16, #tpu.memory_space<vmem>>, vector<128x256xbf16>
    %c0_2 = arith.constant 0 : index
    %c0_3 = arith.constant 0 : index
    %2 = vector.load %arg3[%c0_2, %c0_3] : memref<1x256xf32, #tpu.memory_space<vmem>>, vector<1x256xf32>
    %3 = vector.shape_cast %2 : vector<1x256xf32> to vector<1x256xf32>
    %4 = vector.broadcast %3 : vector<1x256xf32> to vector<8x256xf32>
    %c0_4 = arith.constant 0 : index
    %c0_5 = arith.constant 0 : index
    %5 = vector.load %arg4[%c0_4, %c0_5] : memref<768x128xbf16, #tpu.memory_space<vmem>>, vector<768x128xbf16>
    %c256 = arith.constant 256 : index
    %c0_6 = arith.constant 0 : index
    %6 = vector.load %arg4[%c256, %c0_6] : memref<768x128xbf16, #tpu.memory_space<vmem>>, vector<512x128xbf16>
    %c0_7 = arith.constant 0 : index
    %c0_8 = arith.constant 0 : index
    %7 = vector.load %arg5[%c0_7, %c0_8] : memref<1x128xf32, #tpu.memory_space<vmem>>, vector<1x128xf32>
    %8 = vector.shape_cast %7 : vector<1x128xf32> to vector<1x128xf32>
    %9 = vector.broadcast %8 : vector<1x128xf32> to vector<8x128xf32>
    %c0_9 = arith.constant 0 : index
    %c0_10 = arith.constant 0 : index
    %10 = vector.load %arg6[%c0_9, %c0_10] : memref<384x64xbf16, #tpu.memory_space<vmem>>, vector<384x64xbf16>
    %c128 = arith.constant 128 : index
    %c0_11 = arith.constant 0 : index
    %11 = vector.load %arg6[%c128, %c0_11] : memref<384x64xbf16, #tpu.memory_space<vmem>>, vector<256x64xbf16>
    %c0_12 = arith.constant 0 : index
    %c0_13 = arith.constant 0 : index
    %12 = vector.load %arg7[%c0_12, %c0_13] : memref<1x64xf32, #tpu.memory_space<vmem>>, vector<1x64xf32>
    %13 = vector.shape_cast %12 : vector<1x64xf32> to vector<1x64xf32>
    %14 = vector.broadcast %13 : vector<1x64xf32> to vector<8x64xf32>
    %c64_14 = arith.constant 64 : index
    %c0_15 = arith.constant 0 : index
    %15 = vector.load %arg8[%c64_14, %c0_15] : memref<192x32xbf16, #tpu.memory_space<vmem>>, vector<128x32xbf16>
    %c0_16 = arith.constant 0 : index
    %c0_17 = arith.constant 0 : index
    %16 = vector.load %arg9[%c0_16, %c0_17] : memref<1x32xf32, #tpu.memory_space<vmem>>, vector<1x32xf32>
    %17 = vector.shape_cast %16 : vector<1x32xf32> to vector<1x32xf32>
    %18 = vector.broadcast %17 : vector<1x32xf32> to vector<8x32xf32>
    %c0_18 = arith.constant 0 : index
    %c0_19 = arith.constant 0 : index
    %19 = vector.load %arg1[%c0_18, %c0_19] : memref<8x1024xi8, #tpu.memory_space<vmem>>, vector<8x1024xi8>
    %20 = arith.sitofp %19 : vector<8x1024xi8> to vector<8x1024xf32>
    %cst = arith.constant 0.000000e+00 : f32
    %21 = vector.broadcast %cst : f32 to vector<8x1024xf32>
    %22 = arith.cmpf olt, %20, %21 : vector<8x1024xf32>
    %cst_20 = arith.constant 2.560000e+02 : f32
    %23 = vector.broadcast %cst_20 : f32 to vector<8x1024xf32>
    %24 = arith.addf %20, %23 : vector<8x1024xf32>
    %25 = arith.select %22, %24, %20 : vector<8x1024xi1>, vector<8x1024xf32>
    %cst_21 = arith.constant 0.00392156886 : f32
    %26 = vector.broadcast %cst_21 : f32 to vector<8x1024xf32>
    %27 = arith.mulf %25, %26 : vector<8x1024xf32>
    %28 = arith.truncf %27 : vector<8x1024xf32> to vector<8x1024xbf16>
    %29 = vector.extract_strided_slice %28 {offsets = [0, 0], sizes = [8, 128], strides = [1, 1]} : vector<8x1024xbf16> to vector<8x128xbf16>
    %cst_22 = arith.constant dense<0.000000e+00> : vector<8x256xf32>
    %30 = tpu.matmul %29, %1, %cst_22 {dimension_numbers = #tpu.dot_dimension_numbers<[1], [0], [0], [1], [0, 0, 1, 1], [], []>} : vector<8x128xbf16>, vector<128x256xbf16>, vector<8x256xf32> -> vector<8x256xf32>
    %31 = arith.addf %30, %4 : vector<8x256xf32>
    %cst_23 = arith.constant 0.000000e+00 : f32
    %32 = vector.broadcast %cst_23 : f32 to vector<8x256xf32>
    %33 = arith.cmpf ogt, %31, %32 : vector<8x256xf32>
    %cst_24 = arith.constant 0.000000e+00 : f32
    %34 = vector.broadcast %cst_24 : f32 to vector<8x256xf32>
    %35 = arith.minimumf %31, %34 : vector<8x256xf32>
    %36 = math.exp %35 : vector<8x256xf32>
    %cst_25 = arith.constant 1.000000e+00 : f32
    %37 = vector.broadcast %cst_25 : f32 to vector<8x256xf32>
    %38 = arith.subf %36, %37 : vector<8x256xf32>
    %39 = arith.select %33, %31, %38 : vector<8x256xi1>, vector<8x256xf32>
    %40 = arith.truncf %39 : vector<8x256xf32> to vector<8x256xbf16>
    %c0_26 = arith.constant 0 : index
    %c0_27 = arith.constant 0 : index
    %41 = vector.load %arg11[%c0_26, %c0_27] : memref<8x2048xbf16, #tpu.memory_space<vmem>>, vector<8x256xbf16>
    tpu.vector_store %arg11[%c0_26, %c0_27], %40 {strides = array<i32>} : memref<8x2048xbf16, #tpu.memory_space<vmem>>, vector<8x256xbf16>,
    %42 = vector.extract_strided_slice %28 {offsets = [0, 64], sizes = [8, 192], strides = [1, 1]} : vector<8x1024xbf16> to vector<8x192xbf16>
    %cst_28 = arith.constant dense<0.000000e+00> : vector<8x256xf32>
    %43 = tpu.matmul %42, %0, %cst_28 {dimension_numbers = #tpu.dot_dimension_numbers<[1], [0], [0], [1], [0, 0, 1, 1], [], []>} : vector<8x192xbf16>, vector<192x256xbf16>, vector<8x256xf32> -> vector<8x256xf32>
    %44 = arith.addf %43, %4 : vector<8x256xf32>
    %cst_29 = arith.constant 0.000000e+00 : f32
    %45 = vector.broadcast %cst_29 : f32 to vector<8x256xf32>
    %46 = arith.cmpf ogt, %44, %45 : vector<8x256xf32>
    %cst_30 = arith.constant 0.000000e+00 : f32
    %47 = vector.broadcast %cst_30 : f32 to vector<8x256xf32>
    %48 = arith.minimumf %44, %47 : vector<8x256xf32>
    %49 = math.exp %48 : vector<8x256xf32>
    %cst_31 = arith.constant 1.000000e+00 : f32
    %50 = vector.broadcast %cst_31 : f32 to vector<8x256xf32>
    %51 = arith.subf %49, %50 : vector<8x256xf32>
    %52 = arith.select %46, %44, %51 : vector<8x256xi1>, vector<8x256xf32>
    %53 = arith.truncf %52 : vector<8x256xf32> to vector<8x256xbf16>
    %c0_32 = arith.constant 0 : index
    %c256_33 = arith.constant 256 : index
    %54 = vector.load %arg11[%c0_32, %c256_33] : memref<8x2048xbf16, #tpu.memory_space<vmem>>, vector<8x256xbf16>
    tpu.vector_store %arg11[%c0_32, %c256_33], %53 {strides = array<i32>} : memref<8x2048xbf16, #tpu.memory_space<vmem>>, vector<8x256xbf16>,
    %55 = vector.extract_strided_slice %28 {offsets = [0, 192], sizes = [8, 192], strides = [1, 1]} : vector<8x1024xbf16> to vector<8x192xbf16>
    %cst_34 = arith.constant dense<0.000000e+00> : vector<8x256xf32>
    %56 = tpu.matmul %55, %0, %cst_34 {dimension_numbers = #tpu.dot_dimension_numbers<[1], [0], [0], [1], [0, 0, 1, 1], [], []>} : vector<8x192xbf16>, vector<192x256xbf16>, vector<8x256xf32> -> vector<8x256xf32>
    %57 = arith.addf %56, %4 : vector<8x256xf32>
    %cst_35 = arith.constant 0.000000e+00 : f32
    %58 = vector.broadcast %cst_35 : f32 to vector<8x256xf32>
    %59 = arith.cmpf ogt, %57, %58 : vector<8x256xf32>
    %cst_36 = arith.constant 0.000000e+00 : f32
    %60 = vector.broadcast %cst_36 : f32 to vector<8x256xf32>
    %61 = arith.minimumf %57, %60 : vector<8x256xf32>
    %62 = math.exp %61 : vector<8x256xf32>
    %cst_37 = arith.constant 1.000000e+00 : f32
    %63 = vector.broadcast %cst_37 : f32 to vector<8x256xf32>
    %64 = arith.subf %62, %63 : vector<8x256xf32>
    %65 = arith.select %59, %57, %64 : vector<8x256xi1>, vector<8x256xf32>
    %66 = arith.truncf %65 : vector<8x256xf32> to vector<8x256xbf16>
    %c0_38 = arith.constant 0 : index
    %c512 = arith.constant 512 : index
    %67 = vector.load %arg11[%c0_38, %c512] : memref<8x2048xbf16, #tpu.memory_space<vmem>>, vector<8x256xbf16>
    tpu.vector_store %arg11[%c0_38, %c512], %66 {strides = array<i32>} : memref<8x2048xbf16, #tpu.memory_space<vmem>>, vector<8x256xbf16>,
    %68 = vector.extract_strided_slice %28 {offsets = [0, 320], sizes = [8, 192], strides = [1, 1]} : vector<8x1024xbf16> to vector<8x192xbf16>
    %cst_39 = arith.constant dense<0.000000e+00> : vector<8x256xf32>
    %69 = tpu.matmul %68, %0, %cst_39 {dimension_numbers = #tpu.dot_dimension_numbers<[1], [0], [0], [1], [0, 0, 1, 1], [], []>} : vector<8x192xbf16>, vector<192x256xbf16>, vector<8x256xf32> -> vector<8x256xf32>
    %70 = arith.addf %69, %4 : vector<8x256xf32>
    %cst_40 = arith.constant 0.000000e+00 : f32
    %71 = vector.broadcast %cst_40 : f32 to vector<8x256xf32>
    %72 = arith.cmpf ogt, %70, %71 : vector<8x256xf32>
    %cst_41 = arith.constant 0.000000e+00 : f32
    %73 = vector.broadcast %cst_41 : f32 to vector<8x256xf32>
    %74 = arith.minimumf %70, %73 : vector<8x256xf32>
    %75 = math.exp %74 : vector<8x256xf32>
    %cst_42 = arith.constant 1.000000e+00 : f32
    %76 = vector.broadcast %cst_42 : f32 to vector<8x256xf32>
    %77 = arith.subf %75, %76 : vector<8x256xf32>
    %78 = arith.select %72, %70, %77 : vector<8x256xi1>, vector<8x256xf32>
    %79 = arith.truncf %78 : vector<8x256xf32> to vector<8x256xbf16>
    %c0_43 = arith.constant 0 : index
    %c768 = arith.constant 768 : index
    %80 = vector.load %arg11[%c0_43, %c768] : memref<8x2048xbf16, #tpu.memory_space<vmem>>, vector<8x256xbf16>
    tpu.vector_store %arg11[%c0_43, %c768], %79 {strides = array<i32>} : memref<8x2048xbf16, #tpu.memory_space<vmem>>, vector<8x256xbf16>,
    %81 = vector.extract_strided_slice %28 {offsets = [0, 448], sizes = [8, 192], strides = [1, 1]} : vector<8x1024xbf16> to vector<8x192xbf16>
    %cst_44 = arith.constant dense<0.000000e+00> : vector<8x256xf32>
    %82 = tpu.matmul %81, %0, %cst_44 {dimension_numbers = #tpu.dot_dimension_numbers<[1], [0], [0], [1], [0, 0, 1, 1], [], []>} : vector<8x192xbf16>, vector<192x256xbf16>, vector<8x256xf32> -> vector<8x256xf32>
    %83 = arith.addf %82, %4 : vector<8x256xf32>
    %cst_45 = arith.constant 0.000000e+00 : f32
    %84 = vector.broadcast %cst_45 : f32 to vector<8x256xf32>
    %85 = arith.cmpf ogt, %83, %84 : vector<8x256xf32>
    %cst_46 = arith.constant 0.000000e+00 : f32
    %86 = vector.broadcast %cst_46 : f32 to vector<8x256xf32>
    %87 = arith.minimumf %83, %86 : vector<8x256xf32>
    %88 = math.exp %87 : vector<8x256xf32>
    %cst_47 = arith.constant 1.000000e+00 : f32
    %89 = vector.broadcast %cst_47 : f32 to vector<8x256xf32>
    %90 = arith.subf %88, %89 : vector<8x256xf32>
    %91 = arith.select %85, %83, %90 : vector<8x256xi1>, vector<8x256xf32>
    %92 = arith.truncf %91 : vector<8x256xf32> to vector<8x256xbf16>
    %c0_48 = arith.constant 0 : index
    %c1024 = arith.constant 1024 : index
    %93 = vector.load %arg11[%c0_48, %c1024] : memref<8x2048xbf16, #tpu.memory_space<vmem>>, vector<8x256xbf16>
    tpu.vector_store %arg11[%c0_48, %c1024], %92 {strides = array<i32>} : memref<8x2048xbf16, #tpu.memory_space<vmem>>, vector<8x256xbf16>,
    %94 = vector.extract_strided_slice %28 {offsets = [0, 576], sizes = [8, 192], strides = [1, 1]} : vector<8x1024xbf16> to vector<8x192xbf16>
    %cst_49 = arith.constant dense<0.000000e+00> : vector<8x256xf32>
    %95 = tpu.matmul %94, %0, %cst_49 {dimension_numbers = #tpu.dot_dimension_numbers<[1], [0], [0], [1], [0, 0, 1, 1], [], []>} : vector<8x192xbf16>, vector<192x256xbf16>, vector<8x256xf32> -> vector<8x256xf32>
    %96 = arith.addf %95, %4 : vector<8x256xf32>
    %cst_50 = arith.constant 0.000000e+00 : f32
    %97 = vector.broadcast %cst_50 : f32 to vector<8x256xf32>
    %98 = arith.cmpf ogt, %96, %97 : vector<8x256xf32>
    %cst_51 = arith.constant 0.000000e+00 : f32
    %99 = vector.broadcast %cst_51 : f32 to vector<8x256xf32>
    %100 = arith.minimumf %96, %99 : vector<8x256xf32>
    %101 = math.exp %100 : vector<8x256xf32>
    %cst_52 = arith.constant 1.000000e+00 : f32
    %102 = vector.broadcast %cst_52 : f32 to vector<8x256xf32>
    %103 = arith.subf %101, %102 : vector<8x256xf32>
    %104 = arith.select %98, %96, %103 : vector<8x256xi1>, vector<8x256xf32>
    %105 = arith.truncf %104 : vector<8x256xf32> to vector<8x256xbf16>
    %c0_53 = arith.constant 0 : index
    %c1280 = arith.constant 1280 : index
    %106 = vector.load %arg11[%c0_53, %c1280] : memref<8x2048xbf16, #tpu.memory_space<vmem>>, vector<8x256xbf16>
    tpu.vector_store %arg11[%c0_53, %c1280], %105 {strides = array<i32>} : memref<8x2048xbf16, #tpu.memory_space<vmem>>, vector<8x256xbf16>,
    %107 = vector.extract_strided_slice %28 {offsets = [0, 704], sizes = [8, 192], strides = [1, 1]} : vector<8x1024xbf16> to vector<8x192xbf16>
    %cst_54 = arith.constant dense<0.000000e+00> : vector<8x256xf32>
    %108 = tpu.matmul %107, %0, %cst_54 {dimension_numbers = #tpu.dot_dimension_numbers<[1], [0], [0], [1], [0, 0, 1, 1], [], []>} : vector<8x192xbf16>, vector<192x256xbf16>, vector<8x256xf32> -> vector<8x256xf32>
    %109 = arith.addf %108, %4 : vector<8x256xf32>
    %cst_55 = arith.constant 0.000000e+00 : f32
    %110 = vector.broadcast %cst_55 : f32 to vector<8x256xf32>
    %111 = arith.cmpf ogt, %109, %110 : vector<8x256xf32>
    %cst_56 = arith.constant 0.000000e+00 : f32
    %112 = vector.broadcast %cst_56 : f32 to vector<8x256xf32>
    %113 = arith.minimumf %109, %112 : vector<8x256xf32>
    %114 = math.exp %113 : vector<8x256xf32>
    %cst_57 = arith.constant 1.000000e+00 : f32
    %115 = vector.broadcast %cst_57 : f32 to vector<8x256xf32>
    %116 = arith.subf %114, %115 : vector<8x256xf32>
    %117 = arith.select %111, %109, %116 : vector<8x256xi1>, vector<8x256xf32>
    %118 = arith.truncf %117 : vector<8x256xf32> to vector<8x256xbf16>
    %c0_58 = arith.constant 0 : index
    %c1536 = arith.constant 1536 : index
    %119 = vector.load %arg11[%c0_58, %c1536] : memref<8x2048xbf16, #tpu.memory_space<vmem>>, vector<8x256xbf16>
    tpu.vector_store %arg11[%c0_58, %c1536], %118 {strides = array<i32>} : memref<8x2048xbf16, #tpu.memory_space<vmem>>, vector<8x256xbf16>,
    %120 = vector.extract_strided_slice %28 {offsets = [0, 832], sizes = [8, 192], strides = [1, 1]} : vector<8x1024xbf16> to vector<8x192xbf16>
    %cst_59 = arith.constant dense<0.000000e+00> : vector<8x256xf32>
    %121 = tpu.matmul %120, %0, %cst_59 {dimension_numbers = #tpu.dot_dimension_numbers<[1], [0], [0], [1], [0, 0, 1, 1], [], []>} : vector<8x192xbf16>, vector<192x256xbf16>, vector<8x256xf32> -> vector<8x256xf32>
    %122 = arith.addf %121, %4 : vector<8x256xf32>
    %cst_60 = arith.constant 0.000000e+00 : f32
    %123 = vector.broadcast %cst_60 : f32 to vector<8x256xf32>
    %124 = arith.cmpf ogt, %122, %123 : vector<8x256xf32>
    %cst_61 = arith.constant 0.000000e+00 : f32
    %125 = vector.broadcast %cst_61 : f32 to vector<8x256xf32>
    %126 = arith.minimumf %122, %125 : vector<8x256xf32>
    %127 = math.exp %126 : vector<8x256xf32>
    %cst_62 = arith.constant 1.000000e+00 : f32
    %128 = vector.broadcast %cst_62 : f32 to vector<8x256xf32>
    %129 = arith.subf %127, %128 : vector<8x256xf32>
    %130 = arith.select %124, %122, %129 : vector<8x256xi1>, vector<8x256xf32>
    %131 = arith.truncf %130 : vector<8x256xf32> to vector<8x256xbf16>
    %c0_63 = arith.constant 0 : index
    %c1792 = arith.constant 1792 : index
    %132 = vector.load %arg11[%c0_63, %c1792] : memref<8x2048xbf16, #tpu.memory_space<vmem>>, vector<8x256xbf16>
    tpu.vector_store %arg11[%c0_63, %c1792], %131 {strides = array<i32>} : memref<8x2048xbf16, #tpu.memory_space<vmem>>, vector<8x256xbf16>,
    %c0_64 = arith.constant 0 : index
    %c0_65 = arith.constant 0 : index
    %133 = vector.load %arg11[%c0_64, %c0_65] : memref<8x2048xbf16, #tpu.memory_space<vmem>>, vector<8x512xbf16>
    %cst_66 = arith.constant dense<0.000000e+00> : vector<8x128xf32>
    %134 = tpu.matmul %133, %6, %cst_66 {dimension_numbers = #tpu.dot_dimension_numbers<[1], [0], [0], [1], [0, 0, 1, 1], [], []>} : vector<8x512xbf16>, vector<512x128xbf16>, vector<8x128xf32> -> vector<8x128xf32>
    %135 = arith.addf %134, %9 : vector<8x128xf32>
    %cst_67 = arith.constant 0.000000e+00 : f32
    %136 = vector.broadcast %cst_67 : f32 to vector<8x128xf32>
    %137 = arith.cmpf ogt, %135, %136 : vector<8x128xf32>
    %cst_68 = arith.constant 0.000000e+00 : f32
    %138 = vector.broadcast %cst_68 : f32 to vector<8x128xf32>
    %139 = arith.minimumf %135, %138 : vector<8x128xf32>
    %140 = math.exp %139 : vector<8x128xf32>
    %cst_69 = arith.constant 1.000000e+00 : f32
    %141 = vector.broadcast %cst_69 : f32 to vector<8x128xf32>
    %142 = arith.subf %140, %141 : vector<8x128xf32>
    %143 = arith.select %137, %135, %142 : vector<8x128xi1>, vector<8x128xf32>
    %144 = arith.truncf %143 : vector<8x128xf32> to vector<8x128xbf16>
    %c0_70 = arith.constant 0 : index
    %c0_71 = arith.constant 0 : index
    %145 = vector.load %arg12[%c0_70, %c0_71] : memref<8x512xbf16, #tpu.memory_space<vmem>>, vector<8x128xbf16>
    tpu.vector_store %arg12[%c0_70, %c0_71], %144 {strides = array<i32>} : memref<8x512xbf16, #tpu.memory_space<vmem>>, vector<8x128xbf16>,
    %c0_72 = arith.constant 0 : index
    %c256_73 = arith.constant 256 : index
    %146 = vector.load %arg11[%c0_72, %c256_73] : memref<8x2048xbf16, #tpu.memory_space<vmem>>, vector<8x768xbf16>
    %cst_74 = arith.constant dense<0.000000e+00> : vector<8x128xf32>
    %147 = tpu.matmul %146, %5, %cst_74 {dimension_numbers = #tpu.dot_dimension_numbers<[1], [0], [0], [1], [0, 0, 1, 1], [], []>} : vector<8x768xbf16>, vector<768x128xbf16>, vector<8x128xf32> -> vector<8x128xf32>
    %148 = arith.addf %147, %9 : vector<8x128xf32>
    %cst_75 = arith.constant 0.000000e+00 : f32
    %149 = vector.broadcast %cst_75 : f32 to vector<8x128xf32>
    %150 = arith.cmpf ogt, %148, %149 : vector<8x128xf32>
    %cst_76 = arith.constant 0.000000e+00 : f32
    %151 = vector.broadcast %cst_76 : f32 to vector<8x128xf32>
    %152 = arith.minimumf %148, %151 : vector<8x128xf32>
    %153 = math.exp %152 : vector<8x128xf32>
    %cst_77 = arith.constant 1.000000e+00 : f32
    %154 = vector.broadcast %cst_77 : f32 to vector<8x128xf32>
    %155 = arith.subf %153, %154 : vector<8x128xf32>
    %156 = arith.select %150, %148, %155 : vector<8x128xi1>, vector<8x128xf32>
    %157 = arith.truncf %156 : vector<8x128xf32> to vector<8x128xbf16>
    %c0_78 = arith.constant 0 : index
    %c128_79 = arith.constant 128 : index
    %158 = vector.load %arg12[%c0_78, %c128_79] : memref<8x512xbf16, #tpu.memory_space<vmem>>, vector<8x128xbf16>
    tpu.vector_store %arg12[%c0_78, %c128_79], %157 {strides = array<i32>} : memref<8x512xbf16, #tpu.memory_space<vmem>>, vector<8x128xbf16>,
    %c0_80 = arith.constant 0 : index
    %c768_81 = arith.constant 768 : index
    %159 = vector.load %arg11[%c0_80, %c768_81] : memref<8x2048xbf16, #tpu.memory_space<vmem>>, vector<8x768xbf16>
    %cst_82 = arith.constant dense<0.000000e+00> : vector<8x128xf32>
    %160 = tpu.matmul %159, %5, %cst_82 {dimension_numbers = #tpu.dot_dimension_numbers<[1], [0], [0], [1], [0, 0, 1, 1], [], []>} : vector<8x768xbf16>, vector<768x128xbf16>, vector<8x128xf32> -> vector<8x128xf32>
    %161 = arith.addf %160, %9 : vector<8x128xf32>
    %cst_83 = arith.constant 0.000000e+00 : f32
    %162 = vector.broadcast %cst_83 : f32 to vector<8x128xf32>
    %163 = arith.cmpf ogt, %161, %162 : vector<8x128xf32>
    %cst_84 = arith.constant 0.000000e+00 : f32
    %164 = vector.broadcast %cst_84 : f32 to vector<8x128xf32>
    %165 = arith.minimumf %161, %164 : vector<8x128xf32>
    %166 = math.exp %165 : vector<8x128xf32>
    %cst_85 = arith.constant 1.000000e+00 : f32
    %167 = vector.broadcast %cst_85 : f32 to vector<8x128xf32>
    %168 = arith.subf %166, %167 : vector<8x128xf32>
    %169 = arith.select %163, %161, %168 : vector<8x128xi1>, vector<8x128xf32>
    %170 = arith.truncf %169 : vector<8x128xf32> to vector<8x128xbf16>
    %c0_86 = arith.constant 0 : index
    %c256_87 = arith.constant 256 : index
    %171 = vector.load %arg12[%c0_86, %c256_87] : memref<8x512xbf16, #tpu.memory_space<vmem>>, vector<8x128xbf16>
    tpu.vector_store %arg12[%c0_86, %c256_87], %170 {strides = array<i32>} : memref<8x512xbf16, #tpu.memory_space<vmem>>, vector<8x128xbf16>,
    %c0_88 = arith.constant 0 : index
    %c1280_89 = arith.constant 1280 : index
    %172 = vector.load %arg11[%c0_88, %c1280_89] : memref<8x2048xbf16, #tpu.memory_space<vmem>>, vector<8x768xbf16>
    %cst_90 = arith.constant dense<0.000000e+00> : vector<8x128xf32>
    %173 = tpu.matmul %172, %5, %cst_90 {dimension_numbers = #tpu.dot_dimension_numbers<[1], [0], [0], [1], [0, 0, 1, 1], [], []>} : vector<8x768xbf16>, vector<768x128xbf16>, vector<8x128xf32> -> vector<8x128xf32>
    %174 = arith.addf %173, %9 : vector<8x128xf32>
    %cst_91 = arith.constant 0.000000e+00 : f32
    %175 = vector.broadcast %cst_91 : f32 to vector<8x128xf32>
    %176 = arith.cmpf ogt, %174, %175 : vector<8x128xf32>
    %cst_92 = arith.constant 0.000000e+00 : f32
    %177 = vector.broadcast %cst_92 : f32 to vector<8x128xf32>
    %178 = arith.minimumf %174, %177 : vector<8x128xf32>
    %179 = math.exp %178 : vector<8x128xf32>
    %cst_93 = arith.constant 1.000000e+00 : f32
    %180 = vector.broadcast %cst_93 : f32 to vector<8x128xf32>
    %181 = arith.subf %179, %180 : vector<8x128xf32>
    %182 = arith.select %176, %174, %181 : vector<8x128xi1>, vector<8x128xf32>
    %183 = arith.truncf %182 : vector<8x128xf32> to vector<8x128xbf16>
    %c0_94 = arith.constant 0 : index
    %c384 = arith.constant 384 : index
    %184 = vector.load %arg12[%c0_94, %c384] : memref<8x512xbf16, #tpu.memory_space<vmem>>, vector<8x128xbf16>
    tpu.vector_store %arg12[%c0_94, %c384], %183 {strides = array<i32>} : memref<8x512xbf16, #tpu.memory_space<vmem>>, vector<8x128xbf16>,
    %c0_95 = arith.constant 0 : index
    %c0_96 = arith.constant 0 : index
    %185 = vector.load %arg12[%c0_95, %c0_96] : memref<8x512xbf16, #tpu.memory_space<vmem>>, vector<8x256xbf16>
    %cst_97 = arith.constant dense<0.000000e+00> : vector<8x64xf32>
    %186 = tpu.matmul %185, %11, %cst_97 {dimension_numbers = #tpu.dot_dimension_numbers<[1], [0], [0], [1], [0, 0, 1, 1], [], []>} : vector<8x256xbf16>, vector<256x64xbf16>, vector<8x64xf32> -> vector<8x64xf32>
    %187 = arith.addf %186, %14 : vector<8x64xf32>
    %cst_98 = arith.constant 0.000000e+00 : f32
    %188 = vector.broadcast %cst_98 : f32 to vector<8x64xf32>
    %189 = arith.cmpf ogt, %187, %188 : vector<8x64xf32>
    %cst_99 = arith.constant 0.000000e+00 : f32
    %190 = vector.broadcast %cst_99 : f32 to vector<8x64xf32>
    %191 = arith.minimumf %187, %190 : vector<8x64xf32>
    %192 = math.exp %191 : vector<8x64xf32>
    %cst_100 = arith.constant 1.000000e+00 : f32
    %193 = vector.broadcast %cst_100 : f32 to vector<8x64xf32>
    %194 = arith.subf %192, %193 : vector<8x64xf32>
    %195 = arith.select %189, %187, %194 : vector<8x64xi1>, vector<8x64xf32>
    %196 = arith.truncf %195 : vector<8x64xf32> to vector<8x64xbf16>
    %c0_101 = arith.constant 0 : index
    %c0_102 = arith.constant 0 : index
    %197 = vector.load %arg13[%c0_101, %c0_102] : memref<8x128xbf16, #tpu.memory_space<vmem>>, vector<8x64xbf16>
    tpu.vector_store %arg13[%c0_101, %c0_102], %196 {strides = array<i32>} : memref<8x128xbf16, #tpu.memory_space<vmem>>, vector<8x64xbf16>,
    %c0_103 = arith.constant 0 : index
    %c128_104 = arith.constant 128 : index
    %198 = vector.load %arg12[%c0_103, %c128_104] : memref<8x512xbf16, #tpu.memory_space<vmem>>, vector<8x384xbf16>
    %cst_105 = arith.constant dense<0.000000e+00> : vector<8x64xf32>
    %199 = tpu.matmul %198, %10, %cst_105 {dimension_numbers = #tpu.dot_dimension_numbers<[1], [0], [0], [1], [0, 0, 1, 1], [], []>} : vector<8x384xbf16>, vector<384x64xbf16>, vector<8x64xf32> -> vector<8x64xf32>
    %200 = arith.addf %199, %14 : vector<8x64xf32>
    %cst_106 = arith.constant 0.000000e+00 : f32
    %201 = vector.broadcast %cst_106 : f32 to vector<8x64xf32>
    %202 = arith.cmpf ogt, %200, %201 : vector<8x64xf32>
    %cst_107 = arith.constant 0.000000e+00 : f32
    %203 = vector.broadcast %cst_107 : f32 to vector<8x64xf32>
    %204 = arith.minimumf %200, %203 : vector<8x64xf32>
    %205 = math.exp %204 : vector<8x64xf32>
    %cst_108 = arith.constant 1.000000e+00 : f32
    %206 = vector.broadcast %cst_108 : f32 to vector<8x64xf32>
    %207 = arith.subf %205, %206 : vector<8x64xf32>
    %208 = arith.select %202, %200, %207 : vector<8x64xi1>, vector<8x64xf32>
    %209 = arith.truncf %208 : vector<8x64xf32> to vector<8x64xbf16>
    %c0_109 = arith.constant 0 : index
    %c64_110 = arith.constant 64 : index
    %210 = vector.load %arg13[%c0_109, %c64_110] : memref<8x128xbf16, #tpu.memory_space<vmem>>, vector<8x64xbf16>
    tpu.vector_store %arg13[%c0_109, %c64_110], %209 {strides = array<i32>} : memref<8x128xbf16, #tpu.memory_space<vmem>>, vector<8x64xbf16>,
    %c0_111 = arith.constant 0 : index
    %c0_112 = arith.constant 0 : index
    %211 = vector.load %arg13[%c0_111, %c0_112] : memref<8x128xbf16, #tpu.memory_space<vmem>>, vector<8x128xbf16>
    %cst_113 = arith.constant dense<0.000000e+00> : vector<8x32xf32>
    %212 = tpu.matmul %211, %15, %cst_113 {dimension_numbers = #tpu.dot_dimension_numbers<[1], [0], [0], [1], [0, 0, 1, 1], [], []>} : vector<8x128xbf16>, vector<128x32xbf16>, vector<8x32xf32> -> vector<8x32xf32>
    %213 = arith.addf %212, %18 : vector<8x32xf32>
    %cst_114 = arith.constant 0.000000e+00 : f32
    %214 = vector.broadcast %cst_114 : f32 to vector<8x32xf32>
    %215 = arith.cmpf ogt, %213, %214 : vector<8x32xf32>
    %cst_115 = arith.constant 0.000000e+00 : f32
    %216 = vector.broadcast %cst_115 : f32 to vector<8x32xf32>
    %217 = arith.minimumf %213, %216 : vector<8x32xf32>
    %218 = math.exp %217 : vector<8x32xf32>
    %cst_116 = arith.constant 1.000000e+00 : f32
    %219 = vector.broadcast %cst_116 : f32 to vector<8x32xf32>
    %220 = arith.subf %218, %219 : vector<8x32xf32>
    %221 = arith.select %215, %213, %220 : vector<8x32xi1>, vector<8x32xf32>
    %c0_117 = arith.constant 0 : index
    %c0_118 = arith.constant 0 : index
    %222 = vector.load %arg10[%c0_117, %c0_118] : memref<8x32xf32, #tpu.memory_space<vmem>>, vector<8x32xf32>
    tpu.vector_store %arg10[%c0_117, %c0_118], %221 {strides = array<i32>} : memref<8x32xf32, #tpu.memory_space<vmem>>, vector<8x32xf32>,
    return
  }
  func.func @transform_0(%arg0: i32) -> (i32, i32) {
    %c0_i32 = arith.constant 0 : i32
    %c0_i32_0 = arith.constant 0 : i32
    return %arg0, %c0_i32 : i32, i32
  }
  func.func @transform_1(%arg0: i32) -> (i32, i32) {
    %c0_i32 = arith.constant 0 : i32
    %c0_i32_0 = arith.constant 0 : i32
    %c0_i32_1 = arith.constant 0 : i32
    return %c0_i32, %c0_i32_0 : i32, i32
  }
  func.func @transform_2(%arg0: i32) -> (i32, i32) {
    %c0_i32 = arith.constant 0 : i32
    %c0_i32_0 = arith.constant 0 : i32
    %c0_i32_1 = arith.constant 0 : i32
    return %c0_i32, %c0_i32_0 : i32, i32
  }
  func.func @transform_3(%arg0: i32) -> (i32, i32) {
    %c0_i32 = arith.constant 0 : i32
    %c0_i32_0 = arith.constant 0 : i32
    %c0_i32_1 = arith.constant 0 : i32
    return %c0_i32, %c0_i32_0 : i32, i32
  }
  func.func @transform_4(%arg0: i32) -> (i32, i32) {
    %c0_i32 = arith.constant 0 : i32
    %c0_i32_0 = arith.constant 0 : i32
    %c0_i32_1 = arith.constant 0 : i32
    return %c0_i32, %c0_i32_0 : i32, i32
  }
  func.func @transform_5(%arg0: i32) -> (i32, i32) {
    %c0_i32 = arith.constant 0 : i32
    %c0_i32_0 = arith.constant 0 : i32
    %c0_i32_1 = arith.constant 0 : i32
    return %c0_i32, %c0_i32_0 : i32, i32
  }
  func.func @transform_6(%arg0: i32) -> (i32, i32) {
    %c0_i32 = arith.constant 0 : i32
    %c0_i32_0 = arith.constant 0 : i32
    %c0_i32_1 = arith.constant 0 : i32
    return %c0_i32, %c0_i32_0 : i32, i32
  }
  func.func @transform_7(%arg0: i32) -> (i32, i32) {
    %c0_i32 = arith.constant 0 : i32
    %c0_i32_0 = arith.constant 0 : i32
    %c0_i32_1 = arith.constant 0 : i32
    return %c0_i32, %c0_i32_0 : i32, i32
  }
  func.func @transform_8(%arg0: i32) -> (i32, i32) {
    %c0_i32 = arith.constant 0 : i32
    %c0_i32_0 = arith.constant 0 : i32
    %c0_i32_1 = arith.constant 0 : i32
    return %c0_i32, %c0_i32_0 : i32, i32
  }
  func.func @transform_9(%arg0: i32) -> (i32, i32) {
    %c0_i32 = arith.constant 0 : i32
    %c0_i32_0 = arith.constant 0 : i32
    return %arg0, %c0_i32 : i32, i32
  }
}

</mosaic_0001>

<llo_original>
// kernel: tile.19
$region0: #{tile.19}
  #allocation0 [shape = 's32[1]{0}', space=sflag, size = 0x4, scoped, tag = 'scoped memory for tile.19']
  %s0 = inlined_call_operand.vmem [shape: f32[32], index: 0, kind: input, shape index: {}]
  %s1 = inlined_call_operand.vmem [shape: f32[8,32], index: 1, kind: output, shape index: {}]
  // Predicated region
  $region2: #{tile.19} parent=0 // pred_check
    _
  $region3: #{tile.19} parent=0 // pred_check_branch
    %3 = sbr.rel (0) target = $region5
  $region4: #{tile.19} parent=0 // pred_region
    _
  $region5: #{tile.19} parent=0 // pred_fallthru
    _
  %v4 = vld [vmem:[%s0] ss:$0 sm:$0xff]
  %5 = vst [vmem:[%s1] sm:$0xff] %v4

// kernel: tile.20
$region0: #{tile.20}
  %s0 = inlined_call_operand.vmem [shape: f32[8,32], index: 0, kind: input, shape index: {}]
  %s1 = inlined_call_operand.vmem [shape: f32[1,256], index: 1, kind: output, shape index: {}]
  $region1: #{tile.20} parent=0
    #allocation0 [shape = 'u8[8192]{0}', space=vmem, size = 0x2000, scoped, tag = 'scoped mem for output reshape']
    %s2 = smov 3
    %v3 = vld [vmem:[%s0] ss:$4 sm:%s2]
    %vm4 = vcmask 261120
    %5 = vst.msk [vmem:[#allocation0] ss:$8 sm:$0x3] %vm4, %v3
    %s6 = scalar_lea.vmem %s0, 3
    %s7 = smov 3
    %v8 = vld [vmem:[%s6] ss:$4 sm:%s7]
    %9 = vrot.lane.b32.xlu0 %v8, 96
    %v10 = vpop.permute.xlu0 %9
    %vm11 = vcmask 1048320
    %12 = vst.msk [vmem:[#allocation0] ss:$8 sm:$0x3] %vm11, %v10
    %s13 = scalar_lea.vmem %s0, 2
    %s14 = smov 3
    %v15 = vld [vmem:[%s13] ss:$4 sm:%s14]
    %16 = vrot.lane.b32.xlu0 %v15, 64
    %v17 = vpop.permute.xlu0 %16
    %vm18 = vcmask 785920
    %19 = vst.msk [vmem:[#allocation0] ss:$8 sm:$0x3] %vm18, %v17
    %s20 = scalar_lea.vmem %s0, 1
    %s21 = smov 3
    %v22 = vld [vmem:[%s20] ss:$4 sm:%s21]
    %23 = vrot.lane.b32.xlu0 %v22, 32
    %v24 = vpop.permute.xlu0 %23
    %vm25 = vcmask 523520
    %26 = vst.msk [vmem:[#allocation0] ss:$8 sm:$0x3] %vm25, %v24
    %s28 = sshllo.u32 0, 1
    %v30 = vld [vmem:[#allocation0] sm:%s28]
    %s31 = sshllo.u32 0, 1
    %32 = vst [vmem:[%s1] sm:%s31] %v30
    %s33 = scalar_lea.vmem [#allocation0], 8
    %v34 = vld [vmem:[%s33] sm:%s28]
    %s35 = sshllo.u32 0, 1
    %s36 = scalar_lea.vmem %s1, 1
    %37 = vst [vmem:[%s36] sm:%s35] %v34

// kernel: tile.24
$region0: #{tile.24}
  #allocation0 [shape = 's32[1]{0}', space=sflag, size = 0x4, scoped, tag = 'scoped memory for tile.24']
  %s0 = inlined_call_operand.vmem [shape: f32[32], index: 0, kind: input, shape index: {}]
  %s1 = inlined_call_operand.vmem [shape: f32[4,32], index: 1, kind: output, shape index: {}]
  // Predicated region
  $region2: #{tile.24} parent=0 // pred_check
    _
  $region3: #{tile.24} parent=0 // pred_check_branch
    %3 = sbr.rel (0) target = $region5
  $region4: #{tile.24} parent=0 // pred_region
    _
  $region5: #{tile.24} parent=0 // pred_fallthru
    _
  %v4 = vld [vmem:[%s0] ss:$0 sm:$0xff]
  %5 = vst [vmem:[%s1] sm:$0xf] %v4

// kernel: tile.25
$region0: #{tile.25}
  %s0 = inlined_call_operand.vmem [shape: f32[4,32], index: 0, kind: input, shape index: {}]
  %s1 = inlined_call_operand.vmem [shape: f32[1,128], index: 1, kind: output, shape index: {}]
  $region1: #{tile.25} parent=0
    #allocation0 [shape = 'u8[4096]{0}', space=vmem, size = 0x1000, scoped, tag = 'scoped mem for output reshape']
    #allocation1 [shape = 'u8[4096]{0}', space=vmem, size = 0x1000, scoped, tag = 'scoped mem for input reshape']
    %s3 = sshllo.u32 0, 4
    %v4 = vld [vmem:[%s0] sm:%s3]
    %5 = vst [vmem:[#allocation1] sm:%s3] %v4
    %v6 = vld [vmem:[#allocation1] sm:$0x1]
    %vm7 = vcmask 261120
    %8 = vst.msk [vmem:[#allocation0] sm:$0x1] %vm7, %v6
    %s9 = scalar_lea.vmem [#allocation1], 3
    %v10 = vld [vmem:[%s9] sm:$0x1]
    %11 = vrot.lane.b32.xlu0 %v10, 96
    %v12 = vpop.permute.xlu0 %11
    %vm13 = vcmask 1048320
    %14 = vst.msk [vmem:[#allocation0] sm:$0x1] %vm13, %v12
    %s15 = scalar_lea.vmem [#allocation1], 2
    %v16 = vld [vmem:[%s15] sm:$0x1]
    %17 = vrot.lane.b32.xlu0 %v16, 64
    %v18 = vpop.permute.xlu0 %17
    %vm19 = vcmask 785920
    %20 = vst.msk [vmem:[#allocation0] sm:$0x1] %vm19, %v18
    %s21 = scalar_lea.vmem [#allocation1], 1
    %v22 = vld [vmem:[%s21] sm:$0x1]
    %23 = vrot.lane.b32.xlu0 %v22, 32
    %v24 = vpop.permute.xlu0 %23
    %vm25 = vcmask 523520
    %26 = vst.msk [vmem:[#allocation0] sm:$0x1] %vm25, %v24
    %s28 = sshllo.u32 0, 1
    %v30 = vld [vmem:[#allocation0] sm:%s28]
    %s31 = sshllo.u32 0, 1
    %32 = vst [vmem:[%s1] sm:%s31] %v30

// kernel: tile.29
$region0: #{tile.29}
  #allocation0 [shape = 's32[1]{0}', space=sflag, size = 0x4, scoped, tag = 'scoped memory for tile.29']
  %s0 = inlined_call_operand.vmem [shape: f32[32], index: 0, kind: input, shape index: {}]
  %s1 = inlined_call_operand.vmem [shape: f32[2,32], index: 1, kind: output, shape index: {}]
  // Predicated region
  $region2: #{tile.29} parent=0 // pred_check
    _
  $region3: #{tile.29} parent=0 // pred_check_branch
    %3 = sbr.rel (0) target = $region5
  $region4: #{tile.29} parent=0 // pred_region
    _
  $region5: #{tile.29} parent=0 // pred_fallthru
    _
  %v4 = vld [vmem:[%s0] ss:$0 sm:$0xff]
  %5 = vst [vmem:[%s1] sm:$0x3] %v4

// kernel: tile.30
$region0: #{tile.30}
  %s0 = inlined_call_operand.vmem [shape: f32[2,32], index: 0, kind: input, shape index: {}]
  %s1 = inlined_call_operand.vmem [shape: f32[1,64], index: 1, kind: output, shape index: {}]
  $region1: #{tile.30} parent=0
    #allocation0 [shape = 'u8[4096]{0}', space=vmem, size = 0x1000, scoped, tag = 'scoped mem for output reshape']
    #allocation1 [shape = 'u8[4096]{0}', space=vmem, size = 0x1000, scoped, tag = 'scoped mem for input reshape']
    %s3 = sshllo.u32 0, 2
    %v4 = vld [vmem:[%s0] sm:%s3]
    %5 = vst [vmem:[#allocation1] sm:%s3] %v4
    %v6 = vld [vmem:[#allocation1] sm:$0x1]
    %vm7 = vcmask 261120
    %8 = vst.msk [vmem:[#allocation0] sm:$0x1] %vm7, %v6
    %s9 = scalar_lea.vmem [#allocation1], 1
    %v10 = vld [vmem:[%s9] sm:$0x1]
    %11 = vrot.lane.b32.xlu0 %v10, 32
    %v12 = vpop.permute.xlu0 %11
    %vm13 = vcmask 523520
    %14 = vst.msk [vmem:[#allocation0] sm:$0x1] %vm13, %v12
    %s16 = sshllo.u32 0, 1
    %v18 = vld [vmem:[#allocation0] sm:%s16]
    %s19 = sshllo.u32 0, 1
    %20 = vst [vmem:[%s1] sm:%s19] %v18

// kernel: mario_doom_state_embedding.1
$region0: #{mario_doom_state_embedding.1}
  #allocation0 [shape = 'u32[]', space=smem, size = 0x4, offset = 0x4, fixed_abs, tag = 'smem constant byte address 0x4 - core index']
  #allocation1 [shape = 'u32[144,128]{1,0:T(1,128)}', space=vmem, size = 0x12000, scoped, tag = 'internal scratch']
  #allocation2 [shape = 'bf16[8,2048]{1,0:T(8,128)(2,1)}', space=vmem, size = 0x8000, scoped, tag = 'scratch operand']
  #allocation3 [shape = 'bf16[8,512]{1,0:T(8,128)(2,1)}', space=vmem, size = 0x2000, scoped, tag = 'scratch operand']
  #allocation4 [shape = 'bf16[8,128]{1,0:T(8,128)(2,1)}', space=vmem, size = 0x800, scoped, tag = 'scratch operand']
  %s0 = inlined_call_operand.vmem [shape: s8[8,1024], index: 0, kind: input, shape index: {}]
  %s1 = inlined_call_operand.vmem [shape: bf16[192,256], index: 1, kind: input, shape index: {}]
  %s2 = inlined_call_operand.vmem [shape: f32[1,256], index: 2, kind: input, shape index: {}]
  %s3 = inlined_call_operand.vmem [shape: bf16[768,128], index: 3, kind: input, shape index: {}]
  %s4 = inlined_call_operand.vmem [shape: f32[1,128], index: 4, kind: input, shape index: {}]
  %s5 = inlined_call_operand.vmem [shape: bf16[384,64], index: 5, kind: input, shape index: {}]
  %s6 = inlined_call_operand.vmem [shape: f32[1,64], index: 6, kind: input, shape index: {}]
  %s7 = inlined_call_operand.vmem [shape: bf16[192,32], index: 7, kind: input, shape index: {}]
  %s8 = inlined_call_operand.vmem [shape: f32[1,32], index: 8, kind: input, shape index: {}]
  %s9 = inlined_call_operand.hbm [shape: f32[8,32], index: 9, kind: output, shape index: {}]
  %s10 = sld [smem:[#allocation0]]
  $region46: #{mario_doom_state_embedding.1} parent=0
    _
  %s12 = ssub.s32 1, %s10
  %s13 = scalar_select 0, %s12, %s10
  $region1: #{mario_doom_state_embedding.1} parent=0
    #allocation5 [shape = 'u8[4096]{0}', space=vmem, size = 0x1000, scoped, tag = 'output window, operand 0, single buffered']
    #allocation6 [shape = 's32[1]{0}', space=sflag, size = 0x4, scoped, tag = 'scoped memory for mario_doom_state_embedding.1']
    %14 = vsyncpa [#allocation6], 0
    // Predicated region
    $region2: #{mario_doom_state_embedding.1} parent=1 // pred_check
      _
    $region3: #{mario_doom_state_embedding.1} parent=1 // pred_check_branch
      %16 = sbr.rel (0) target = $region5
    $region4: #{mario_doom_state_embedding.1} parent=1 // pred_region
      _
    $region5: #{mario_doom_state_embedding.1} parent=1 // pred_fallthru
      _
    // Predicated region
    $region6: #{mario_doom_state_embedding.1} parent=1 // pred_check
      _
    $region7: #{mario_doom_state_embedding.1} parent=1 // pred_check_branch
      %18 = sbr.rel (0) target = $region9
    $region8: #{mario_doom_state_embedding.1} parent=1 // pred_region
      _
    $region9: #{mario_doom_state_embedding.1} parent=1 // pred_fallthru
      _
    // Predicated region
    $region10: #{mario_doom_state_embedding.1} parent=1 // pred_check
      _
    $region11: #{mario_doom_state_embedding.1} parent=1 // pred_check_branch
      %20 = sbr.rel (0) target = $region13
    $region12: #{mario_doom_state_embedding.1} parent=1 // pred_region
      _
    $region13: #{mario_doom_state_embedding.1} parent=1 // pred_fallthru
      _
    // Predicated region
    $region14: #{mario_doom_state_embedding.1} parent=1 // pred_check
      _
    $region15: #{mario_doom_state_embedding.1} parent=1 // pred_check_branch
      %22 = sbr.rel (0) target = $region17
    $region16: #{mario_doom_state_embedding.1} parent=1 // pred_region
      _
    $region17: #{mario_doom_state_embedding.1} parent=1 // pred_fallthru
      _
    // Predicated region
    $region18: #{mario_doom_state_embedding.1} parent=1 // pred_check
      _
    $region19: #{mario_doom_state_embedding.1} parent=1 // pred_check_branch
      %24 = sbr.rel (0) target = $region21
    $region20: #{mario_doom_state_embedding.1} parent=1 // pred_region
      _
    $region21: #{mario_doom_state_embedding.1} parent=1 // pred_fallthru
      _
    // Predicated region
    $region22: #{mario_doom_state_embedding.1} parent=1 // pred_check
      _
    $region23: #{mario_doom_state_embedding.1} parent=1 // pred_check_branch
      %26 = sbr.rel (0) target = $region25
    $region24: #{mario_doom_state_embedding.1} parent=1 // pred_region
      _
    $region25: #{mario_doom_state_embedding.1} parent=1 // pred_fallthru
      _
    // Predicated region
    $region26: #{mario_doom_state_embedding.1} parent=1 // pred_check
      _
    $region27: #{mario_doom_state_embedding.1} parent=1 // pred_check_branch
      %28 = sbr.rel (0) target = $region29
    $region28: #{mario_doom_state_embedding.1} parent=1 // pred_region
      _
    $region29: #{mario_doom_state_embedding.1} parent=1 // pred_fallthru
      _
    // Predicated region
    $region30: #{mario_doom_state_embedding.1} parent=1 // pred_check
      _
    $region31: #{mario_doom_state_embedding.1} parent=1 // pred_check_branch
      %30 = sbr.rel (0) target = $region33
    $region32: #{mario_doom_state_embedding.1} parent=1 // pred_region
      _
    $region33: #{mario_doom_state_embedding.1} parent=1 // pred_fallthru
      _
    // Predicated region
    $region34: #{mario_doom_state_embedding.1} parent=1 // pred_check
      _
    $region35: #{mario_doom_state_embedding.1} parent=1 // pred_check_branch
      %32 = sbr.rel (0) target = $region37
    $region36: #{mario_doom_state_embedding.1} parent=1 // pred_region
      _
    $region37: #{mario_doom_state_embedding.1} parent=1 // pred_fallthru
      _
    %v34 = vld [vmem:[%s1] sm:$0xff]
    %v35 = vld [vmem:[%s1 + $0x8] sm:$0xff]
    %v36 = vld [vmem:[%s1 + $0x10] sm:$0xff]
    %v37 = vld [vmem:[%s1 + $0x18] sm:$0xff]
    %v38 = vld [vmem:[%s1 + $0x20] sm:$0xff]
    %v39 = vld [vmem:[%s1 + $0x28] sm:$0xff]
    %v40 = vld [vmem:[%s1 + $0x30] sm:$0xff]
    %v41 = vld [vmem:[%s1 + $0x38] sm:$0xff]
    %v42 = vld [vmem:[%s1 + $0x40] sm:$0xff]
    %v43 = vld [vmem:[%s1 + $0x48] sm:$0xff]
    %v44 = vld [vmem:[%s1 + $0x50] sm:$0xff]
    %v45 = vld [vmem:[%s1 + $0x58] sm:$0xff]
    %v46 = vld [vmem:[%s1 + $0x60] sm:$0xff]
    %v47 = vld [vmem:[%s1 + $0x68] sm:$0xff]
    %v48 = vld [vmem:[%s1 + $0x70] sm:$0xff]
    %v49 = vld [vmem:[%s1 + $0x78] sm:$0xff]
    %v50 = vld [vmem:[%s1 + $0x80] sm:$0xff]
    %v51 = vld [vmem:[%s1 + $0x88] sm:$0xff]
    %v52 = vld [vmem:[%s1 + $0x90] sm:$0xff]
    %v53 = vld [vmem:[%s1 + $0x98] sm:$0xff]
    %v54 = vld [vmem:[%s1 + $0xa0] sm:$0xff]
    %v55 = vld [vmem:[%s1 + $0xa8] sm:$0xff]
    %v56 = vld [vmem:[%s1 + $0xb0] sm:$0xff]
    %v57 = vld [vmem:[%s1 + $0xb8] sm:$0xff]
    %v58 = vld [vmem:[%s2] sm:$0x3]
    %v60 = vlaneseq
    %v61 = vshrl.u32 %v60, 7
    %v62 = vsub.s32 0, %v61
    %v63 = vrot.slane %v58, %v62
    %v64 = vlaneseq
    %v65 = vshrl.u32 %v64, 7
    %v66 = vsub.s32 1, %v65
    %v67 = vrot.slane %v58, %v66
    %v70 = vld [vmem:[%s3] sm:$0xf]
    %v71 = vld [vmem:[%s3 + $0x4] sm:$0xf]
    %v72 = vld [vmem:[%s3 + $0x8] sm:$0xf]
    %v73 = vld [vmem:[%s3 + $0xc] sm:$0xf]
    %v74 = vld [vmem:[%s3 + $0x10] sm:$0xf]
    %v75 = vld [vmem:[%s3 + $0x14] sm:$0xf]
    %v76 = vld [vmem:[%s3 + $0x18] sm:$0xf]
    %v77 = vld [vmem:[%s3 + $0x1c] sm:$0xf]
    %v78 = vld [vmem:[%s3 + $0x20] sm:$0xf]
    %v79 = vld [vmem:[%s3 + $0x24] sm:$0xf]
    %v80 = vld [vmem:[%s3 + $0x28] sm:$0xf]
    %v81 = vld [vmem:[%s3 + $0x2c] sm:$0xf]
    %v82 = vld [vmem:[%s3 + $0x30] sm:$0xf]
    %v83 = vld [vmem:[%s3 + $0x34] sm:$0xf]
    %v84 = vld [vmem:[%s3 + $0x38] sm:$0xf]
    %v85 = vld [vmem:[%s3 + $0x3c] sm:$0xf]
    %v86 = vld [vmem:[%s3 + $0x40] sm:$0xf]
    %v87 = vld [vmem:[%s3 + $0x44] sm:$0xf]
    %v88 = vld [vmem:[%s3 + $0x48] sm:$0xf]
    %v89 = vld [vmem:[%s3 + $0x4c] sm:$0xf]
    %v90 = vld [vmem:[%s3 + $0x50] sm:$0xf]
    %v91 = vld [vmem:[%s3 + $0x54] sm:$0xf]
    %v92 = vld [vmem:[%s3 + $0x58] sm:$0xf]
    %v93 = vld [vmem:[%s3 + $0x5c] sm:$0xf]
    %v94 = vld [vmem:[%s3 + $0x60] sm:$0xf]
    %v95 = vld [vmem:[%s3 + $0x64] sm:$0xf]
    %v96 = vld [vmem:[%s3 + $0x68] sm:$0xf]
    %v97 = vld [vmem:[%s3 + $0x6c] sm:$0xf]
    %v98 = vld [vmem:[%s3 + $0x70] sm:$0xf]
    %v99 = vld [vmem:[%s3 + $0x74] sm:$0xf]
    %v100 = vld [vmem:[%s3 + $0x78] sm:$0xf]
    %v101 = vld [vmem:[%s3 + $0x7c] sm:$0xf]
    %v102 = vld [vmem:[%s3 + $0x80] sm:$0xf]
    %v103 = vld [vmem:[%s3 + $0x84] sm:$0xf]
    %v104 = vld [vmem:[%s3 + $0x88] sm:$0xf]
    %v105 = vld [vmem:[%s3 + $0x8c] sm:$0xf]
    %v106 = vld [vmem:[%s3 + $0x90] sm:$0xf]
    %v107 = vld [vmem:[%s3 + $0x94] sm:$0xf]
    %v108 = vld [vmem:[%s3 + $0x98] sm:$0xf]
    %v109 = vld [vmem:[%s3 + $0x9c] sm:$0xf]
    %v110 = vld [vmem:[%s3 + $0xa0] sm:$0xf]
    %v111 = vld [vmem:[%s3 + $0xa4] sm:$0xf]
    %v112 = vld [vmem:[%s3 + $0xa8] sm:$0xf]
    %v113 = vld [vmem:[%s3 + $0xac] sm:$0xf]
    %v114 = vld [vmem:[%s3 + $0xb0] sm:$0xf]
    %v115 = vld [vmem:[%s3 + $0xb4] sm:$0xf]
    %v116 = vld [vmem:[%s3 + $0xb8] sm:$0xf]
    %v117 = vld [vmem:[%s3 + $0xbc] sm:$0xf]
    %v118 = vld [vmem:[%s3 + $0xc0] sm:$0xf]
    %v119 = vld [vmem:[%s3 + $0xc4] sm:$0xf]
    %v120 = vld [vmem:[%s3 + $0xc8] sm:$0xf]
    %v121 = vld [vmem:[%s3 + $0xcc] sm:$0xf]
    %v122 = vld [vmem:[%s3 + $0xd0] sm:$0xf]
    %v123 = vld [vmem:[%s3 + $0xd4] sm:$0xf]
    %v124 = vld [vmem:[%s3 + $0xd8] sm:$0xf]
    %v125 = vld [vmem:[%s3 + $0xdc] sm:$0xf]
    %v126 = vld [vmem:[%s3 + $0xe0] sm:$0xf]
    %v127 = vld [vmem:[%s3 + $0xe4] sm:$0xf]
    %v128 = vld [vmem:[%s3 + $0xe8] sm:$0xf]
    %v129 = vld [vmem:[%s3 + $0xec] sm:$0xf]
    %v130 = vld [vmem:[%s3 + $0xf0] sm:$0xf]
    %v131 = vld [vmem:[%s3 + $0xf4] sm:$0xf]
    %v132 = vld [vmem:[%s3 + $0xf8] sm:$0xf]
    %v133 = vld [vmem:[%s3 + $0xfc] sm:$0xf]
    %v134 = vld [vmem:[%s3 + $0x100] sm:$0xf]
    %v135 = vld [vmem:[%s3 + $0x104] sm:$0xf]
    %v136 = vld [vmem:[%s3 + $0x108] sm:$0xf]
    %v137 = vld [vmem:[%s3 + $0x10c] sm:$0xf]
    %v138 = vld [vmem:[%s3 + $0x110] sm:$0xf]
    %v139 = vld [vmem:[%s3 + $0x114] sm:$0xf]
    %v140 = vld [vmem:[%s3 + $0x118] sm:$0xf]
    %v141 = vld [vmem:[%s3 + $0x11c] sm:$0xf]
    %v142 = vld [vmem:[%s3 + $0x120] sm:$0xf]
    %v143 = vld [vmem:[%s3 + $0x124] sm:$0xf]
    %v144 = vld [vmem:[%s3 + $0x128] sm:$0xf]
    %v145 = vld [vmem:[%s3 + $0x12c] sm:$0xf]
    %v146 = vld [vmem:[%s3 + $0x130] sm:$0xf]
    %v147 = vld [vmem:[%s3 + $0x134] sm:$0xf]
    %v148 = vld [vmem:[%s3 + $0x138] sm:$0xf]
    %v149 = vld [vmem:[%s3 + $0x13c] sm:$0xf]
    %v150 = vld [vmem:[%s3 + $0x140] sm:$0xf]
    %v151 = vld [vmem:[%s3 + $0x144] sm:$0xf]
    %v152 = vld [vmem:[%s3 + $0x148] sm:$0xf]
    %v153 = vld [vmem:[%s3 + $0x14c] sm:$0xf]
    %v154 = vld [vmem:[%s3 + $0x150] sm:$0xf]
    %v155 = vld [vmem:[%s3 + $0x154] sm:$0xf]
    %v156 = vld [vmem:[%s3 + $0x158] sm:$0xf]
    %v157 = vld [vmem:[%s3 + $0x15c] sm:$0xf]
    %v158 = vld [vmem:[%s3 + $0x160] sm:$0xf]
    %v159 = vld [vmem:[%s3 + $0x164] sm:$0xf]
    %v160 = vld [vmem:[%s3 + $0x168] sm:$0xf]
    %v161 = vld [vmem:[%s3 + $0x16c] sm:$0xf]
    %v162 = vld [vmem:[%s3 + $0x170] sm:$0xf]
    %v163 = vld [vmem:[%s3 + $0x174] sm:$0xf]
    %v164 = vld [vmem:[%s3 + $0x178] sm:$0xf]
    %v165 = vld [vmem:[%s3 + $0x17c] sm:$0xf]
    %v166 = vld [vmem:[%s4] sm:$0x1]
    %v168 = vlaneseq
    %v169 = vshrl.u32 %v168, 7
    %v170 = vsub.s32 0, %v169
    %v171 = vrot.slane %v166, %v170
    %v173 = vld [vmem:[%s5] sm:$0xf]
    %v174 = vld [vmem:[%s5 + $0x4] sm:$0xf]
    %v175 = vld [vmem:[%s5 + $0x8] sm:$0xf]
    %v176 = vld [vmem:[%s5 + $0xc] sm:$0xf]
    %v177 = vld [vmem:[%s5 + $0x10] sm:$0xf]
    %v178 = vld [vmem:[%s5 + $0x14] sm:$0xf]
    %v179 = vld [vmem:[%s5 + $0x18] sm:$0xf]
    %v180 = vld [vmem:[%s5 + $0x1c] sm:$0xf]
    %v181 = vld [vmem:[%s5 + $0x20] sm:$0xf]
    %v182 = vld [vmem:[%s5 + $0x24] sm:$0xf]
    %v183 = vld [vmem:[%s5 + $0x28] sm:$0xf]
    %v184 = vld [vmem:[%s5 + $0x2c] sm:$0xf]
    %v185 = vld [vmem:[%s5 + $0x30] sm:$0xf]
    %v186 = vld [vmem:[%s5 + $0x34] sm:$0xf]
    %v187 = vld [vmem:[%s5 + $0x38] sm:$0xf]
    %v188 = vld [vmem:[%s5 + $0x3c] sm:$0xf]
    %v189 = vld [vmem:[%s5 + $0x40] sm:$0xf]
    %v190 = vld [vmem:[%s5 + $0x44] sm:$0xf]
    %v191 = vld [vmem:[%s5 + $0x48] sm:$0xf]
    %v192 = vld [vmem:[%s5 + $0x4c] sm:$0xf]
    %v193 = vld [vmem:[%s5 + $0x50] sm:$0xf]
    %v194 = vld [vmem:[%s5 + $0x54] sm:$0xf]
    %v195 = vld [vmem:[%s5 + $0x58] sm:$0xf]
    %v196 = vld [vmem:[%s5 + $0x5c] sm:$0xf]
    %v197 = vld [vmem:[%s5 + $0x60] sm:$0xf]
    %v198 = vld [vmem:[%s5 + $0x64] sm:$0xf]
    %v199 = vld [vmem:[%s5 + $0x68] sm:$0xf]
    %v200 = vld [vmem:[%s5 + $0x6c] sm:$0xf]
    %v201 = vld [vmem:[%s5 + $0x70] sm:$0xf]
    %v202 = vld [vmem:[%s5 + $0x74] sm:$0xf]
    %v203 = vld [vmem:[%s5 + $0x78] sm:$0xf]
    %v204 = vld [vmem:[%s5 + $0x7c] sm:$0xf]
    %v205 = vld [vmem:[%s5 + $0x80] sm:$0xf]
    %v206 = vld [vmem:[%s5 + $0x84] sm:$0xf]
    %v207 = vld [vmem:[%s5 + $0x88] sm:$0xf]
    %v208 = vld [vmem:[%s5 + $0x8c] sm:$0xf]
    %v209 = vld [vmem:[%s5 + $0x90] sm:$0xf]
    %v210 = vld [vmem:[%s5 + $0x94] sm:$0xf]
    %v211 = vld [vmem:[%s5 + $0x98] sm:$0xf]
    %v212 = vld [vmem:[%s5 + $0x9c] sm:$0xf]
    %v213 = vld [vmem:[%s5 + $0xa0] sm:$0xf]
    %v214 = vld [vmem:[%s5 + $0xa4] sm:$0xf]
    %v215 = vld [vmem:[%s5 + $0xa8] sm:$0xf]
    %v216 = vld [vmem:[%s5 + $0xac] sm:$0xf]
    %v217 = vld [vmem:[%s5 + $0xb0] sm:$0xf]
    %v218 = vld [vmem:[%s5 + $0xb4] sm:$0xf]
    %v219 = vld [vmem:[%s5 + $0xb8] sm:$0xf]
    %v220 = vld [vmem:[%s5 + $0xbc] sm:$0xf]
    %v221 = vld [vmem:[%s6] sm:$0x1]
    %v223 = vlaneseq
    %v224 = vshrl.u32 %v223, 7
    %v225 = vsub.s32 0, %v224
    %v226 = vrot.slane %v221, %v225
    %v228 = vld [vmem:[%s7 + $0x20] sm:$0xf]
    %v229 = vld [vmem:[%s7 + $0x24] sm:$0xf]
    %v230 = vld [vmem:[%s7 + $0x28] sm:$0xf]
    %v231 = vld [vmem:[%s7 + $0x2c] sm:$0xf]
    %v232 = vld [vmem:[%s7 + $0x30] sm:$0xf]
    %v233 = vld [vmem:[%s7 + $0x34] sm:$0xf]
    %v234 = vld [vmem:[%s7 + $0x38] sm:$0xf]
    %v235 = vld [vmem:[%s7 + $0x3c] sm:$0xf]
    %v236 = vld [vmem:[%s7 + $0x40] sm:$0xf]
    %v237 = vld [vmem:[%s7 + $0x44] sm:$0xf]
    %v238 = vld [vmem:[%s7 + $0x48] sm:$0xf]
    %v239 = vld [vmem:[%s7 + $0x4c] sm:$0xf]
    %v240 = vld [vmem:[%s7 + $0x50] sm:$0xf]
    %v241 = vld [vmem:[%s7 + $0x54] sm:$0xf]
    %v242 = vld [vmem:[%s7 + $0x58] sm:$0xf]
    %v243 = vld [vmem:[%s7 + $0x5c] sm:$0xf]
    %v244 = vld [vmem:[%s8] sm:$0x1]
    %v246 = vlaneseq
    %v247 = vshrl.u32 %v246, 7
    %v248 = vsub.s32 0, %v247
    %v249 = vrot.slane %v244, %v248
    %v251 = vld [vmem:[%s0] sm:$0xff]
    %v252 = vld [vmem:[%s0 + $0x8] sm:$0xff]
    %v253 = vunpack.c.0.s8 %v251
    %v254 = vunpack.c.1.s8 %v251
    %v255 = vunpack.c.2.s8 %v251
    %v256 = vunpack.c.3.s8 %v251
    %v257 = vunpack.c.0.s8 %v252
    %v258 = vunpack.c.1.s8 %v252
    %v259 = vunpack.c.2.s8 %v252
    %v260 = vunpack.c.3.s8 %v252
    %v261 = vcvt.s32.f32 %v253
    %v262 = vcvt.s32.f32 %v254
    %v263 = vcvt.s32.f32 %v255
    %v264 = vcvt.s32.f32 %v256
    %v265 = vcvt.s32.f32 %v257
    %v266 = vcvt.s32.f32 %v258
    %v267 = vcvt.s32.f32 %v259
    %v268 = vcvt.s32.f32 %v260
    %vm269 = vcmp.lt.f32.partialorder %v261, 0.0
    %vm270 = vcmp.lt.f32.partialorder %v262, 0.0
    %vm271 = vcmp.lt.f32.partialorder %v263, 0.0
    %vm272 = vcmp.lt.f32.partialorder %v264, 0.0
    %vm273 = vcmp.lt.f32.partialorder %v265, 0.0
    %vm274 = vcmp.lt.f32.partialorder %v266, 0.0
    %vm275 = vcmp.lt.f32.partialorder %v267, 0.0
    %vm276 = vcmp.lt.f32.partialorder %v268, 0.0
    %v277 = vadd.f32 %v261, 256.0
    %v278 = vadd.f32 %v262, 256.0
    %v279 = vadd.f32 %v263, 256.0
    %v280 = vadd.f32 %v264, 256.0
    %v281 = vadd.f32 %v265, 256.0
    %v282 = vadd.f32 %v266, 256.0
    %v283 = vadd.f32 %v267, 256.0
    %v284 = vadd.f32 %v268, 256.0
    %v285 = vsel %vm269, %v277, %v261
    %v286 = vsel %vm270, %v278, %v262
    %v287 = vsel %vm271, %v279, %v263
    %v288 = vsel %vm272, %v280, %v264
    %v289 = vsel %vm273, %v281, %v265
    %v290 = vsel %vm274, %v282, %v266
    %v291 = vsel %vm275, %v283, %v267
    %v292 = vsel %vm276, %v284, %v268
    %v293 = vmul.f32 %v285, 0.003921569
    %v294 = vmul.f32 %v286, 0.003921569
    %v295 = vmul.f32 %v287, 0.003921569
    %v296 = vmul.f32 %v288, 0.003921569
    %v297 = vmul.f32 %v289, 0.003921569
    %v298 = vmul.f32 %v290, 0.003921569
    %v299 = vmul.f32 %v291, 0.003921569
    %v300 = vmul.f32 %v292, 0.003921569
    %v301 = vpack.c.bf16 %v293, %v293
    %v302 = vpack.c.bf16 %v294, %v294
    %v303 = vpack.c.bf16 %v295, %v295
    %v304 = vpack.c.bf16 %v296, %v296
    %v305 = vpack.c.bf16 %v297, %v297
    %v306 = vpack.c.bf16 %v298, %v298
    %v307 = vpack.c.bf16 %v299, %v299
    %v308 = vpack.c.bf16 %v300, %v300
    %v325 = vunpack.c.l.b16 %v42
    %v326 = vunpack.c.h.b16 %v42
    %v327 = vunpack.c.l.b16 %v43
    %v328 = vunpack.c.h.b16 %v43
    %v329 = vunpack.c.l.b16 %v44
    %v330 = vunpack.c.h.b16 %v44
    %v331 = vunpack.c.l.b16 %v45
    %v332 = vunpack.c.h.b16 %v45
    %v333 = vunpack.c.l.b16 %v46
    %v334 = vunpack.c.h.b16 %v46
    %v335 = vunpack.c.l.b16 %v47
    %v336 = vunpack.c.h.b16 %v47
    %v337 = vunpack.c.l.b16 %v48
    %v338 = vunpack.c.h.b16 %v48
    %v339 = vunpack.c.l.b16 %v49
    %v340 = vunpack.c.h.b16 %v49
    %v341 = vunpack.c.l.b16 %v50
    %v342 = vunpack.c.h.b16 %v50
    %v343 = vunpack.c.l.b16 %v51
    %v344 = vunpack.c.h.b16 %v51
    %v345 = vunpack.c.l.b16 %v52
    %v346 = vunpack.c.h.b16 %v52
    %v347 = vunpack.c.l.b16 %v53
    %v348 = vunpack.c.h.b16 %v53
    %v349 = vunpack.c.l.b16 %v54
    %v350 = vunpack.c.h.b16 %v54
    %v351 = vunpack.c.l.b16 %v55
    %v352 = vunpack.c.h.b16 %v55
    %v353 = vunpack.c.l.b16 %v56
    %v354 = vunpack.c.h.b16 %v56
    %v355 = vunpack.c.l.b16 %v57
    %v356 = vunpack.c.h.b16 %v57
    %v357 = vpack.c.b16 %v327, %v325
    %v358 = vpack.c.b16 %v328, %v326
    %v359 = vpack.c.b16 %v331, %v329
    %v360 = vpack.c.b16 %v332, %v330
    %v361 = vpack.c.b16 %v335, %v333
    %v362 = vpack.c.b16 %v336, %v334
    %v363 = vpack.c.b16 %v339, %v337
    %v364 = vpack.c.b16 %v340, %v338
    %v365 = vpack.c.b16 %v343, %v341
    %v366 = vpack.c.b16 %v344, %v342
    %v367 = vpack.c.b16 %v347, %v345
    %v368 = vpack.c.b16 %v348, %v346
    %v369 = vpack.c.b16 %v351, %v349
    %v370 = vpack.c.b16 %v352, %v350
    %v371 = vpack.c.b16 %v355, %v353
    %v372 = vpack.c.b16 %v356, %v354
    %389 = vmatprep.subr.bf16.mxu0 %v358
    %390 = vmatpush1.bf16.msra.mxu0 %v357
    %391 = vmatprep.subr.bf16.mxu0 %v360
    %392 = vmatpush1.bf16.msra.mxu0 %v359
    %393 = vmatprep.subr.bf16.mxu0 %v362
    %394 = vmatpush1.bf16.msra.mxu0 %v361
    %395 = vmatprep.subr.bf16.mxu0 %v364
    %396 = vmatpush1.bf16.msra.mxu0 %v363
    %397 = vmatprep.subr.bf16.mxu0 %v366
    %398 = vmatpush1.bf16.msra.mxu0 %v365
    %399 = vmatprep.subr.bf16.mxu0 %v368
    %400 = vmatpush1.bf16.msra.mxu0 %v367
    %401 = vmatprep.subr.bf16.mxu0 %v370
    %402 = vmatpush1.bf16.msra.mxu0 %v369
    %403 = vmatprep.subr.bf16.mxu0 %v372
    %404 = vmatpush1.bf16.msra.mxu0 %v371
    %405 = vmatprep.subr.bf16.mxu0 0
    %406 = vmatpush1.bf16.msra.mxu0 0
    %407 = vmatprep.subr.bf16.mxu0 0
    %408 = vmatpush1.bf16.msra.mxu0 0
    %409 = vmatprep.subr.bf16.mxu0 0
    %410 = vmatpush1.bf16.msra.mxu0 0
    %411 = vmatprep.subr.bf16.mxu0 0
    %412 = vmatpush1.bf16.msra.mxu0 0
    %413 = vmatprep.subr.bf16.mxu0 0
    %414 = vmatpush1.bf16.msra.mxu0 0
    %415 = vmatprep.subr.bf16.mxu0 0
    %416 = vmatpush1.bf16.msra.mxu0 0
    %417 = vmatprep.subr.bf16.mxu0 0
    %418 = vmatpush1.bf16.msra.mxu0 0
    %419 = vmatprep.subr.bf16.mxu0 0
    %420 = vmatpush1.bf16.msra.mxu0 0
    %421 = vmatprep.mubr.bf16.mxu0 0
    %422 = vmatmul.mubr.bf16.gmra.mrb[0].mxu0 %v301
    %v423 = vpop.f32.mrb[0].mxu0
    %v424 = vadd.f32 %v63, %v423
    %v425 = vpop.f32.mrb[0].mxu0
    %v426 = vadd.f32 %v67, %v425
    %v427 = vpop.f32.mrb[0].mxu0
    %v428 = vpop.f32.mrb[0].mxu0
    %429 = vdwg.mxu0
    %vm430 = vcmp.gt.f32.partialorder %v424, 0.0
    %vm431 = vcmp.gt.f32.partialorder %v426, 0.0
    %v432 = vmin.f32 %v424, 0.0
    %v433 = vmin.f32 %v426, 0.0
    %v434 = vmul.f32 %v432, 1.442695
    %v435 = vpow.pop %v434
    %v436 = vmul.f32 %v433, 1.442695
    %v437 = vpow.pop %v436
    %v438 = vsub.f32 %v435, 1.0
    %v439 = vsub.f32 %v437, 1.0
    %v440 = vsel %vm430, %v424, %v438
    %v441 = vsel %vm431, %v426, %v439
    %v442 = vpack.c.bf16 %v440, %v440
    %v443 = vpack.c.bf16 %v441, %v441
    %v446 = vunpack.c.l.b16 %v442
    %v447 = vunpack.c.l.b16 %v443
    %v448 = vpack.c.b16 %v447, %v446
    %450 = vst [vmem:[#allocation2] sm:$0xff] %v448
    %453 = vrot.lane.b32.xlu0 %v301, 64
    %v454 = vpop.permute.xlu0 %453
    %455 = vrot.lane.b32.xlu0 %v302, 64
    %v456 = vpop.permute.xlu0 %455
    %vm457 = vcmask 523264
    %v458 = vsel %vm457, %v454, %v456
    %v468 = vunpack.c.l.b16 %v34
    %v469 = vunpack.c.h.b16 %v34
    %v470 = vunpack.c.l.b16 %v35
    %v471 = vunpack.c.h.b16 %v35
    %v472 = vunpack.c.l.b16 %v36
    %v473 = vunpack.c.h.b16 %v36
    %v474 = vunpack.c.l.b16 %v37
    %v475 = vunpack.c.h.b16 %v37
    %v476 = vunpack.c.l.b16 %v38
    %v477 = vunpack.c.h.b16 %v38
    %v478 = vunpack.c.l.b16 %v39
    %v479 = vunpack.c.h.b16 %v39
    %v480 = vunpack.c.l.b16 %v40
    %v481 = vunpack.c.h.b16 %v40
    %v482 = vunpack.c.l.b16 %v41
    %v483 = vunpack.c.h.b16 %v41
    %v484 = vpack.c.b16 %v470, %v468
    %v485 = vpack.c.b16 %v471, %v469
    %v486 = vpack.c.b16 %v474, %v472
    %v487 = vpack.c.b16 %v475, %v473
    %v488 = vpack.c.b16 %v478, %v476
    %v489 = vpack.c.b16 %v479, %v477
    %v490 = vpack.c.b16 %v482, %v480
    %v491 = vpack.c.b16 %v483, %v481
    %vm500 = vcmask 523264
    %v502 = vsel %vm500, %v456, 0
    %504 = vmatprep.subr.bf16.mxu0 %v485
    %505 = vmatpush1.bf16.msra.mxu0 %v484
    %506 = vmatprep.subr.bf16.mxu0 %v487
    %507 = vmatpush1.bf16.msra.mxu0 %v486
    %508 = vmatprep.subr.bf16.mxu0 %v489
    %509 = vmatpush1.bf16.msra.mxu0 %v488
    %510 = vmatprep.subr.bf16.mxu0 %v491
    %511 = vmatpush1.bf16.msra.mxu0 %v490
    %512 = vmatprep.subr.bf16.mxu0 %v358
    %513 = vmatpush1.bf16.msra.mxu0 %v357
    %514 = vmatprep.subr.bf16.mxu0 %v360
    %515 = vmatpush1.bf16.msra.mxu0 %v359
    %516 = vmatprep.subr.bf16.mxu0 %v362
    %517 = vmatpush1.bf16.msra.mxu0 %v361
    %518 = vmatprep.subr.bf16.mxu0 %v364
    %519 = vmatpush1.bf16.msra.mxu0 %v363
    %520 = vmatprep.subr.bf16.mxu0 %v366
    %521 = vmatpush1.bf16.msra.mxu0 %v365
    %522 = vmatprep.subr.bf16.mxu0 %v368
    %523 = vmatpush1.bf16.msra.mxu0 %v367
    %524 = vmatprep.subr.bf16.mxu0 %v370
    %525 = vmatpush1.bf16.msra.mxu0 %v369
    %526 = vmatprep.subr.bf16.mxu0 %v372
    %527 = vmatpush1.bf16.msra.mxu0 %v371
    %528 = vmatprep.subr.bf16.mxu0 0
    %529 = vmatpush1.bf16.msra.mxu0 0
    %530 = vmatprep.subr.bf16.mxu0 0
    %531 = vmatpush1.bf16.msra.mxu0 0
    %532 = vmatprep.subr.bf16.mxu0 0
    %533 = vmatpush1.bf16.msra.mxu0 0
    %534 = vmatprep.subr.bf16.mxu0 0
    %535 = vmatpush1.bf16.msra.mxu0 0
    %536 = vmatprep.mubr.bf16.mxu0 %v502
    %537 = vmatmul.mubr.bf16.gmra.mrb[0].mxu0 %v458
    %v538 = vpop.f32.mrb[0].mxu0
    %v539 = vadd.f32 %v63, %v538
    %v540 = vpop.f32.mrb[0].mxu0
    %v541 = vadd.f32 %v67, %v540
    %v542 = vpop.f32.mrb[0].mxu0
    %v543 = vpop.f32.mrb[0].mxu0
    %544 = vdwg.mxu0
    %vm545 = vcmp.gt.f32.partialorder %v539, 0.0
    %vm546 = vcmp.gt.f32.partialorder %v541, 0.0
    %v547 = vmin.f32 %v539, 0.0
    %v548 = vmin.f32 %v541, 0.0
    %v549 = vmul.f32 %v547, 1.442695
    %v550 = vpow.pop %v549
    %v551 = vmul.f32 %v548, 1.442695
    %v552 = vpow.pop %v551
    %v553 = vsub.f32 %v550, 1.0
    %v554 = vsub.f32 %v552, 1.0
    %v555 = vsel %vm545, %v539, %v553
    %v556 = vsel %vm546, %v541, %v554
    %v557 = vpack.c.bf16 %v555, %v555
    %v558 = vpack.c.bf16 %v556, %v556
    %v561 = vunpack.c.l.b16 %v557
    %v562 = vunpack.c.l.b16 %v558
    %v563 = vpack.c.b16 %v562, %v561
    %565 = vst [vmem:[#allocation2 + $0x8] sm:$0xff] %v563
    %567 = vrot.lane.b32.xlu0 %v303, 64
    %v568 = vpop.permute.xlu0 %567
    %v569 = vsel %vm457, %v456, %v568
    %v572 = vsel %vm500, %v568, 0
    %574 = vmatprep.subr.bf16.mxu0 %v485
    %575 = vmatpush1.bf16.msra.mxu0 %v484
    %576 = vmatprep.subr.bf16.mxu0 %v487
    %577 = vmatpush1.bf16.msra.mxu0 %v486
    %578 = vmatprep.subr.bf16.mxu0 %v489
    %579 = vmatpush1.bf16.msra.mxu0 %v488
    %580 = vmatprep.subr.bf16.mxu0 %v491
    %581 = vmatpush1.bf16.msra.mxu0 %v490
    %582 = vmatprep.subr.bf16.mxu0 %v358
    %583 = vmatpush1.bf16.msra.mxu0 %v357
    %584 = vmatprep.subr.bf16.mxu0 %v360
    %585 = vmatpush1.bf16.msra.mxu0 %v359
    %586 = vmatprep.subr.bf16.mxu0 %v362
    %587 = vmatpush1.bf16.msra.mxu0 %v361
    %588 = vmatprep.subr.bf16.mxu0 %v364
    %589 = vmatpush1.bf16.msra.mxu0 %v363
    %590 = vmatprep.subr.bf16.mxu0 %v366
    %591 = vmatpush1.bf16.msra.mxu0 %v365
    %592 = vmatprep.subr.bf16.mxu0 %v368
    %593 = vmatpush1.bf16.msra.mxu0 %v367
    %594 = vmatprep.subr.bf16.mxu0 %v370
    %595 = vmatpush1.bf16.msra.mxu0 %v369
    %596 = vmatprep.subr.bf16.mxu0 %v372
    %597 = vmatpush1.bf16.msra.mxu0 %v371
    %598 = vmatprep.subr.bf16.mxu0 0
    %599 = vmatpush1.bf16.msra.mxu0 0
    %600 = vmatprep.subr.bf16.mxu0 0
    %601 = vmatpush1.bf16.msra.mxu0 0
    %602 = vmatprep.subr.bf16.mxu0 0
    %603 = vmatpush1.bf16.msra.mxu0 0
    %604 = vmatprep.subr.bf16.mxu0 0
    %605 = vmatpush1.bf16.msra.mxu0 0
    %606 = vmatprep.mubr.bf16.mxu0 %v572
    %607 = vmatmul.mubr.bf16.gmra.mrb[0].mxu0 %v569
    %v608 = vpop.f32.mrb[0].mxu0
    %v609 = vadd.f32 %v63, %v608
    %v610 = vpop.f32.mrb[0].mxu0
    %v611 = vadd.f32 %v67, %v610
    %v612 = vpop.f32.mrb[0].mxu0
    %v613 = vpop.f32.mrb[0].mxu0
    %614 = vdwg.mxu0
    %vm615 = vcmp.gt.f32.partialorder %v609, 0.0
    %vm616 = vcmp.gt.f32.partialorder %v611, 0.0
    %v617 = vmin.f32 %v609, 0.0
    %v618 = vmin.f32 %v611, 0.0
    %v619 = vmul.f32 %v617, 1.442695
    %v620 = vpow.pop %v619
    %v621 = vmul.f32 %v618, 1.442695
    %v622 = vpow.pop %v621
    %v623 = vsub.f32 %v620, 1.0
    %v624 = vsub.f32 %v622, 1.0
    %v625 = vsel %vm615, %v609, %v623
    %v626 = vsel %vm616, %v611, %v624
    %v627 = vpack.c.bf16 %v625, %v625
    %v628 = vpack.c.bf16 %v626, %v626
    %v631 = vunpack.c.l.b16 %v627
    %v632 = vunpack.c.l.b16 %v628
    %v633 = vpack.c.b16 %v632, %v631
    %635 = vst [vmem:[#allocation2 + $0x10] sm:$0xff] %v633
    %637 = vrot.lane.b32.xlu0 %v304, 64
    %v638 = vpop.permute.xlu0 %637
    %v639 = vsel %vm457, %v568, %v638
    %v642 = vsel %vm500, %v638, 0
    %644 = vmatprep.subr.bf16.mxu0 %v485
    %645 = vmatpush1.bf16.msra.mxu0 %v484
    %646 = vmatprep.subr.bf16.mxu0 %v487
    %647 = vmatpush1.bf16.msra.mxu0 %v486
    %648 = vmatprep.subr.bf16.mxu0 %v489
    %649 = vmatpush1.bf16.msra.mxu0 %v488
    %650 = vmatprep.subr.bf16.mxu0 %v491
    %651 = vmatpush1.bf16.msra.mxu0 %v490
    %652 = vmatprep.subr.bf16.mxu0 %v358
    %653 = vmatpush1.bf16.msra.mxu0 %v357
    %654 = vmatprep.subr.bf16.mxu0 %v360
    %655 = vmatpush1.bf16.msra.mxu0 %v359
    %656 = vmatprep.subr.bf16.mxu0 %v362
    %657 = vmatpush1.bf16.msra.mxu0 %v361
    %658 = vmatprep.subr.bf16.mxu0 %v364
    %659 = vmatpush1.bf16.msra.mxu0 %v363
    %660 = vmatprep.subr.bf16.mxu0 %v366
    %661 = vmatpush1.bf16.msra.mxu0 %v365
    %662 = vmatprep.subr.bf16.mxu0 %v368
    %663 = vmatpush1.bf16.msra.mxu0 %v367
    %664 = vmatprep.subr.bf16.mxu0 %v370
    %665 = vmatpush1.bf16.msra.mxu0 %v369
    %666 = vmatprep.subr.bf16.mxu0 %v372
    %667 = vmatpush1.bf16.msra.mxu0 %v371
    %668 = vmatprep.subr.bf16.mxu0 0
    %669 = vmatpush1.bf16.msra.mxu0 0
    %670 = vmatprep.subr.bf16.mxu0 0
    %671 = vmatpush1.bf16.msra.mxu0 0
    %672 = vmatprep.subr.bf16.mxu0 0
    %673 = vmatpush1.bf16.msra.mxu0 0
    %674 = vmatprep.subr.bf16.mxu0 0
    %675 = vmatpush1.bf16.msra.mxu0 0
    %676 = vmatprep.mubr.bf16.mxu0 %v642
    %677 = vmatmul.mubr.bf16.gmra.mrb[0].mxu0 %v639
    %v678 = vpop.f32.mrb[0].mxu0
    %v679 = vadd.f32 %v63, %v678
    %v680 = vpop.f32.mrb[0].mxu0
    %v681 = vadd.f32 %v67, %v680
    %v682 = vpop.f32.mrb[0].mxu0
    %v683 = vpop.f32.mrb[0].mxu0
    %684 = vdwg.mxu0
    %vm685 = vcmp.gt.f32.partialorder %v679, 0.0
    %vm686 = vcmp.gt.f32.partialorder %v681, 0.0
    %v687 = vmin.f32 %v679, 0.0
    %v688 = vmin.f32 %v681, 0.0
    %v689 = vmul.f32 %v687, 1.442695
    %v690 = vpow.pop %v689
    %v691 = vmul.f32 %v688, 1.442695
    %v692 = vpow.pop %v691
    %v693 = vsub.f32 %v690, 1.0
    %v694 = vsub.f32 %v692, 1.0
    %v695 = vsel %vm685, %v679, %v693
    %v696 = vsel %vm686, %v681, %v694
    %v697 = vpack.c.bf16 %v695, %v695
    %v698 = vpack.c.bf16 %v696, %v696
    %v701 = vunpack.c.l.b16 %v697
    %v702 = vunpack.c.l.b16 %v698
    %v703 = vpack.c.b16 %v702, %v701
    %705 = vst [vmem:[#allocation2 + $0x18] sm:$0xff] %v703
    %707 = vrot.lane.b32.xlu0 %v305, 64
    %v708 = vpop.permute.xlu0 %707
    %v709 = vsel %vm457, %v638, %v708
    %v712 = vsel %vm500, %v708, 0
    %714 = vmatprep.subr.bf16.mxu0 %v485
    %715 = vmatpush1.bf16.msra.mxu0 %v484
    %716 = vmatprep.subr.bf16.mxu0 %v487
    %717 = vmatpush1.bf16.msra.mxu0 %v486
    %718 = vmatprep.subr.bf16.mxu0 %v489
    %719 = vmatpush1.bf16.msra.mxu0 %v488
    %720 = vmatprep.subr.bf16.mxu0 %v491
    %721 = vmatpush1.bf16.msra.mxu0 %v490
    %722 = vmatprep.subr.bf16.mxu0 %v358
    %723 = vmatpush1.bf16.msra.mxu0 %v357
    %724 = vmatprep.subr.bf16.mxu0 %v360
    %725 = vmatpush1.bf16.msra.mxu0 %v359
    %726 = vmatprep.subr.bf16.mxu0 %v362
    %727 = vmatpush1.bf16.msra.mxu0 %v361
    %728 = vmatprep.subr.bf16.mxu0 %v364
    %729 = vmatpush1.bf16.msra.mxu0 %v363
    %730 = vmatprep.subr.bf16.mxu0 %v366
    %731 = vmatpush1.bf16.msra.mxu0 %v365
    %732 = vmatprep.subr.bf16.mxu0 %v368
    %733 = vmatpush1.bf16.msra.mxu0 %v367
    %734 = vmatprep.subr.bf16.mxu0 %v370
    %735 = vmatpush1.bf16.msra.mxu0 %v369
    %736 = vmatprep.subr.bf16.mxu0 %v372
    %737 = vmatpush1.bf16.msra.mxu0 %v371
    %738 = vmatprep.subr.bf16.mxu0 0
    %739 = vmatpush1.bf16.msra.mxu0 0
    %740 = vmatprep.subr.bf16.mxu0 0
    %741 = vmatpush1.bf16.msra.mxu0 0
    %742 = vmatprep.subr.bf16.mxu0 0
    %743 = vmatpush1.bf16.msra.mxu0 0
    %744 = vmatprep.subr.bf16.mxu0 0
    %745 = vmatpush1.bf16.msra.mxu0 0
    %746 = vmatprep.mubr.bf16.mxu0 %v712
    %747 = vmatmul.mubr.bf16.gmra.mrb[0].mxu0 %v709
    %v748 = vpop.f32.mrb[0].mxu0
    %v749 = vadd.f32 %v63, %v748
    %v750 = vpop.f32.mrb[0].mxu0
    %v751 = vadd.f32 %v67, %v750
    %v752 = vpop.f32.mrb[0].mxu0
    %v753 = vpop.f32.mrb[0].mxu0
    %754 = vdwg.mxu0
    %vm755 = vcmp.gt.f32.partialorder %v749, 0.0
    %vm756 = vcmp.gt.f32.partialorder %v751, 0.0
    %v757 = vmin.f32 %v749, 0.0
    %v758 = vmin.f32 %v751, 0.0
    %v759 = vmul.f32 %v757, 1.442695
    %v760 = vpow.pop %v759
    %v761 = vmul.f32 %v758, 1.442695
    %v762 = vpow.pop %v761
    %v763 = vsub.f32 %v760, 1.0
    %v764 = vsub.f32 %v762, 1.0
    %v765 = vsel %vm755, %v749, %v763
    %v766 = vsel %vm756, %v751, %v764
    %v767 = vpack.c.bf16 %v765, %v765
    %v768 = vpack.c.bf16 %v766, %v766
    %v771 = vunpack.c.l.b16 %v767
    %v772 = vunpack.c.l.b16 %v768
    %v773 = vpack.c.b16 %v772, %v771
    %775 = vst [vmem:[#allocation2 + $0x20] sm:$0xff] %v773
    %777 = vrot.lane.b32.xlu0 %v306, 64
    %v778 = vpop.permute.xlu0 %777
    %v779 = vsel %vm457, %v708, %v778
    %v782 = vsel %vm500, %v778, 0
    %784 = vmatprep.subr.bf16.mxu0 %v485
    %785 = vmatpush1.bf16.msra.mxu0 %v484
    %786 = vmatprep.subr.bf16.mxu0 %v487
    %787 = vmatpush1.bf16.msra.mxu0 %v486
    %788 = vmatprep.subr.bf16.mxu0 %v489
    %789 = vmatpush1.bf16.msra.mxu0 %v488
    %790 = vmatprep.subr.bf16.mxu0 %v491
    %791 = vmatpush1.bf16.msra.mxu0 %v490
    %792 = vmatprep.subr.bf16.mxu0 %v358
    %793 = vmatpush1.bf16.msra.mxu0 %v357
    %794 = vmatprep.subr.bf16.mxu0 %v360
    %795 = vmatpush1.bf16.msra.mxu0 %v359
    %796 = vmatprep.subr.bf16.mxu0 %v362
    %797 = vmatpush1.bf16.msra.mxu0 %v361
    %798 = vmatprep.subr.bf16.mxu0 %v364
    %799 = vmatpush1.bf16.msra.mxu0 %v363
    %800 = vmatprep.subr.bf16.mxu0 %v366
    %801 = vmatpush1.bf16.msra.mxu0 %v365
    %802 = vmatprep.subr.bf16.mxu0 %v368
    %803 = vmatpush1.bf16.msra.mxu0 %v367
    %804 = vmatprep.subr.bf16.mxu0 %v370
    %805 = vmatpush1.bf16.msra.mxu0 %v369
    %806 = vmatprep.subr.bf16.mxu0 %v372
    %807 = vmatpush1.bf16.msra.mxu0 %v371
    %808 = vmatprep.subr.bf16.mxu0 0
    %809 = vmatpush1.bf16.msra.mxu0 0
    %810 = vmatprep.subr.bf16.mxu0 0
    %811 = vmatpush1.bf16.msra.mxu0 0
    %812 = vmatprep.subr.bf16.mxu0 0
    %813 = vmatpush1.bf16.msra.mxu0 0
    %814 = vmatprep.subr.bf16.mxu0 0
    %815 = vmatpush1.bf16.msra.mxu0 0
    %816 = vmatprep.mubr.bf16.mxu0 %v782
    %817 = vmatmul.mubr.bf16.gmra.mrb[0].mxu0 %v779
    %v818 = vpop.f32.mrb[0].mxu0
    %v819 = vadd.f32 %v63, %v818
    %v820 = vpop.f32.mrb[0].mxu0
    %v821 = vadd.f32 %v67, %v820
    %v822 = vpop.f32.mrb[0].mxu0
    %v823 = vpop.f32.mrb[0].mxu0
    %824 = vdwg.mxu0
    %vm825 = vcmp.gt.f32.partialorder %v819, 0.0
    %vm826 = vcmp.gt.f32.partialorder %v821, 0.0
    %v827 = vmin.f32 %v819, 0.0
    %v828 = vmin.f32 %v821, 0.0
    %v829 = vmul.f32 %v827, 1.442695
    %v830 = vpow.pop %v829
    %v831 = vmul.f32 %v828, 1.442695
    %v832 = vpow.pop %v831
    %v833 = vsub.f32 %v830, 1.0
    %v834 = vsub.f32 %v832, 1.0
    %v835 = vsel %vm825, %v819, %v833
    %v836 = vsel %vm826, %v821, %v834
    %v837 = vpack.c.bf16 %v835, %v835
    %v838 = vpack.c.bf16 %v836, %v836
    %v841 = vunpack.c.l.b16 %v837
    %v842 = vunpack.c.l.b16 %v838
    %v843 = vpack.c.b16 %v842, %v841
    %845 = vst [vmem:[#allocation2 + $0x28] sm:$0xff] %v843
    %847 = vrot.lane.b32.xlu0 %v307, 64
    %v848 = vpop.permute.xlu0 %847
    %v849 = vsel %vm457, %v778, %v848
    %v852 = vsel %vm500, %v848, 0
    %854 = vmatprep.subr.bf16.mxu0 %v485
    %855 = vmatpush1.bf16.msra.mxu0 %v484
    %856 = vmatprep.subr.bf16.mxu0 %v487
    %857 = vmatpush1.bf16.msra.mxu0 %v486
    %858 = vmatprep.subr.bf16.mxu0 %v489
    %859 = vmatpush1.bf16.msra.mxu0 %v488
    %860 = vmatprep.subr.bf16.mxu0 %v491
    %861 = vmatpush1.bf16.msra.mxu0 %v490
    %862 = vmatprep.subr.bf16.mxu0 %v358
    %863 = vmatpush1.bf16.msra.mxu0 %v357
    %864 = vmatprep.subr.bf16.mxu0 %v360
    %865 = vmatpush1.bf16.msra.mxu0 %v359
    %866 = vmatprep.subr.bf16.mxu0 %v362
    %867 = vmatpush1.bf16.msra.mxu0 %v361
    %868 = vmatprep.subr.bf16.mxu0 %v364
    %869 = vmatpush1.bf16.msra.mxu0 %v363
    %870 = vmatprep.subr.bf16.mxu0 %v366
    %871 = vmatpush1.bf16.msra.mxu0 %v365
    %872 = vmatprep.subr.bf16.mxu0 %v368
    %873 = vmatpush1.bf16.msra.mxu0 %v367
    %874 = vmatprep.subr.bf16.mxu0 %v370
    %875 = vmatpush1.bf16.msra.mxu0 %v369
    %876 = vmatprep.subr.bf16.mxu0 %v372
    %877 = vmatpush1.bf16.msra.mxu0 %v371
    %878 = vmatprep.subr.bf16.mxu0 0
    %879 = vmatpush1.bf16.msra.mxu0 0
    %880 = vmatprep.subr.bf16.mxu0 0
    %881 = vmatpush1.bf16.msra.mxu0 0
    %882 = vmatprep.subr.bf16.mxu0 0
    %883 = vmatpush1.bf16.msra.mxu0 0
    %884 = vmatprep.subr.bf16.mxu0 0
    %885 = vmatpush1.bf16.msra.mxu0 0
    %886 = vmatprep.mubr.bf16.mxu0 %v852
    %887 = vmatmul.mubr.bf16.gmra.mrb[0].mxu0 %v849
    %v888 = vpop.f32.mrb[0].mxu0
    %v889 = vadd.f32 %v63, %v888
    %v890 = vpop.f32.mrb[0].mxu0
    %v891 = vadd.f32 %v67, %v890
    %v892 = vpop.f32.mrb[0].mxu0
    %v893 = vpop.f32.mrb[0].mxu0
    %894 = vdwg.mxu0
    %vm895 = vcmp.gt.f32.partialorder %v889, 0.0
    %vm896 = vcmp.gt.f32.partialorder %v891, 0.0
    %v897 = vmin.f32 %v889, 0.0
    %v898 = vmin.f32 %v891, 0.0
    %v899 = vmul.f32 %v897, 1.442695
    %v900 = vpow.pop %v899
    %v901 = vmul.f32 %v898, 1.442695
    %v902 = vpow.pop %v901
    %v903 = vsub.f32 %v900, 1.0
    %v904 = vsub.f32 %v902, 1.0
    %v905 = vsel %vm895, %v889, %v903
    %v906 = vsel %vm896, %v891, %v904
    %v907 = vpack.c.bf16 %v905, %v905
    %v908 = vpack.c.bf16 %v906, %v906
    %v911 = vunpack.c.l.b16 %v907
    %v912 = vunpack.c.l.b16 %v908
    %v913 = vpack.c.b16 %v912, %v911
    %915 = vst [vmem:[#allocation2 + $0x30] sm:$0xff] %v913
    %917 = vrot.lane.b32.xlu0 %v308, 64
    %v918 = vpop.permute.xlu0 %917
    %v919 = vsel %vm457, %v848, %v918
    %v922 = vsel %vm500, %v918, 0
    %924 = vmatprep.subr.bf16.mxu0 %v485
    %925 = vmatpush1.bf16.msra.mxu0 %v484
    %926 = vmatprep.subr.bf16.mxu0 %v487
    %927 = vmatpush1.bf16.msra.mxu0 %v486
    %928 = vmatprep.subr.bf16.mxu0 %v489
    %929 = vmatpush1.bf16.msra.mxu0 %v488
    %930 = vmatprep.subr.bf16.mxu0 %v491
    %931 = vmatpush1.bf16.msra.mxu0 %v490
    %932 = vmatprep.subr.bf16.mxu0 %v358
    %933 = vmatpush1.bf16.msra.mxu0 %v357
    %934 = vmatprep.subr.bf16.mxu0 %v360
    %935 = vmatpush1.bf16.msra.mxu0 %v359
    %936 = vmatprep.subr.bf16.mxu0 %v362
    %937 = vmatpush1.bf16.msra.mxu0 %v361
    %938 = vmatprep.subr.bf16.mxu0 %v364
    %939 = vmatpush1.bf16.msra.mxu0 %v363
    %940 = vmatprep.subr.bf16.mxu0 %v366
    %941 = vmatpush1.bf16.msra.mxu0 %v365
    %942 = vmatprep.subr.bf16.mxu0 %v368
    %943 = vmatpush1.bf16.msra.mxu0 %v367
    %944 = vmatprep.subr.bf16.mxu0 %v370
    %945 = vmatpush1.bf16.msra.mxu0 %v369
    %946 = vmatprep.subr.bf16.mxu0 %v372
    %947 = vmatpush1.bf16.msra.mxu0 %v371
    %948 = vmatprep.subr.bf16.mxu0 0
    %949 = vmatpush1.bf16.msra.mxu0 0
    %950 = vmatprep.subr.bf16.mxu0 0
    %951 = vmatpush1.bf16.msra.mxu0 0
    %952 = vmatprep.subr.bf16.mxu0 0
    %953 = vmatpush1.bf16.msra.mxu0 0
    %954 = vmatprep.subr.bf16.mxu0 0
    %955 = vmatpush1.bf16.msra.mxu0 0
    %956 = vmatprep.mubr.bf16.mxu0 %v922
    %957 = vmatmul.mubr.bf16.gmra.mrb[0].mxu0 %v919
    %v958 = vpop.f32.mrb[0].mxu0
    %v959 = vadd.f32 %v63, %v958
    %v960 = vpop.f32.mrb[0].mxu0
    %v961 = vadd.f32 %v67, %v960
    %v962 = vpop.f32.mrb[0].mxu0
    %v963 = vpop.f32.mrb[0].mxu0
    %964 = vdwg.mxu0
    %vm965 = vcmp.gt.f32.partialorder %v959, 0.0
    %vm966 = vcmp.gt.f32.partialorder %v961, 0.0
    %v967 = vmin.f32 %v959, 0.0
    %v968 = vmin.f32 %v961, 0.0
    %v969 = vmul.f32 %v967, 1.442695
    %v970 = vpow.pop %v969
    %v971 = vmul.f32 %v968, 1.442695
    %v972 = vpow.pop %v971
    %v973 = vsub.f32 %v970, 1.0
    %v974 = vsub.f32 %v972, 1.0
    %v975 = vsel %vm965, %v959, %v973
    %v976 = vsel %vm966, %v961, %v974
    %v977 = vpack.c.bf16 %v975, %v975
    %v978 = vpack.c.bf16 %v976, %v976
    %v981 = vunpack.c.l.b16 %v977
    %v982 = vunpack.c.l.b16 %v978
    %v983 = vpack.c.b16 %v982, %v981
    %985 = vst [vmem:[#allocation2 + $0x38] sm:$0xff] %v983
    %v986 = vld [vmem:[#allocation2] sm:$0xff]
    %v987 = vld [vmem:[#allocation2 + $0x8] sm:$0xff]
    %v990 = vunpack.c.l.b16 %v986
    %v991 = vunpack.c.h.b16 %v986
    %v992 = vunpack.c.l.b16 %v987
    %v993 = vunpack.c.h.b16 %v987
    %v994 = vpack.c.b16 %v990, %v990
    %v995 = vpack.c.b16 %v991, %v991
    %v996 = vpack.c.b16 %v992, %v992
    %v997 = vpack.c.b16 %v993, %v993
    %v1066 = vunpack.c.l.b16 %v102
    %v1067 = vunpack.c.l.b16 %v103
    %v1068 = vunpack.c.l.b16 %v104
    %v1069 = vunpack.c.l.b16 %v105
    %v1070 = vunpack.c.l.b16 %v106
    %v1071 = vunpack.c.l.b16 %v107
    %v1072 = vunpack.c.l.b16 %v108
    %v1073 = vunpack.c.l.b16 %v109
    %v1074 = vunpack.c.l.b16 %v110
    %v1075 = vunpack.c.l.b16 %v111
    %v1076 = vunpack.c.l.b16 %v112
    %v1077 = vunpack.c.l.b16 %v113
    %v1078 = vunpack.c.l.b16 %v114
    %v1079 = vunpack.c.l.b16 %v115
    %v1080 = vunpack.c.l.b16 %v116
    %v1081 = vunpack.c.l.b16 %v117
    %v1082 = vunpack.c.l.b16 %v118
    %v1083 = vunpack.c.l.b16 %v119
    %v1084 = vunpack.c.l.b16 %v120
    %v1085 = vunpack.c.l.b16 %v121
    %v1086 = vunpack.c.l.b16 %v122
    %v1087 = vunpack.c.l.b16 %v123
    %v1088 = vunpack.c.l.b16 %v124
    %v1089 = vunpack.c.l.b16 %v125
    %v1090 = vunpack.c.l.b16 %v126
    %v1091 = vunpack.c.l.b16 %v127
    %v1092 = vunpack.c.l.b16 %v128
    %v1093 = vunpack.c.l.b16 %v129
    %v1094 = vunpack.c.l.b16 %v130
    %v1095 = vunpack.c.l.b16 %v131
    %v1096 = vunpack.c.l.b16 %v132
    %v1097 = vunpack.c.l.b16 %v133
    %v1098 = vunpack.c.l.b16 %v134
    %v1099 = vunpack.c.l.b16 %v135
    %v1100 = vunpack.c.l.b16 %v136
    %v1101 = vunpack.c.l.b16 %v137
    %v1102 = vunpack.c.l.b16 %v138
    %v1103 = vunpack.c.l.b16 %v139
    %v1104 = vunpack.c.l.b16 %v140
    %v1105 = vunpack.c.l.b16 %v141
    %v1106 = vunpack.c.l.b16 %v142
    %v1107 = vunpack.c.l.b16 %v143
    %v1108 = vunpack.c.l.b16 %v144
    %v1109 = vunpack.c.l.b16 %v145
    %v1110 = vunpack.c.l.b16 %v146
    %v1111 = vunpack.c.l.b16 %v147
    %v1112 = vunpack.c.l.b16 %v148
    %v1113 = vunpack.c.l.b16 %v149
    %v1114 = vunpack.c.l.b16 %v150
    %v1115 = vunpack.c.l.b16 %v151
    %v1116 = vunpack.c.l.b16 %v152
    %v1117 = vunpack.c.l.b16 %v153
    %v1118 = vunpack.c.l.b16 %v154
    %v1119 = vunpack.c.l.b16 %v155
    %v1120 = vunpack.c.l.b16 %v156
    %v1121 = vunpack.c.l.b16 %v157
    %v1122 = vunpack.c.l.b16 %v158
    %v1123 = vunpack.c.l.b16 %v159
    %v1124 = vunpack.c.l.b16 %v160
    %v1125 = vunpack.c.l.b16 %v161
    %v1126 = vunpack.c.l.b16 %v162
    %v1127 = vunpack.c.l.b16 %v163
    %v1128 = vunpack.c.l.b16 %v164
    %v1129 = vunpack.c.l.b16 %v165
    %v1130 = vpack.c.b16 %v1067, %v1066
    %v1131 = vpack.c.b16 %v1069, %v1068
    %v1132 = vpack.c.b16 %v1071, %v1070
    %v1133 = vpack.c.b16 %v1073, %v1072
    %v1134 = vpack.c.b16 %v1075, %v1074
    %v1135 = vpack.c.b16 %v1077, %v1076
    %v1136 = vpack.c.b16 %v1079, %v1078
    %v1137 = vpack.c.b16 %v1081, %v1080
    %v1138 = vpack.c.b16 %v1083, %v1082
    %v1139 = vpack.c.b16 %v1085, %v1084
    %v1140 = vpack.c.b16 %v1087, %v1086
    %v1141 = vpack.c.b16 %v1089, %v1088
    %v1142 = vpack.c.b16 %v1091, %v1090
    %v1143 = vpack.c.b16 %v1093, %v1092
    %v1144 = vpack.c.b16 %v1095, %v1094
    %v1145 = vpack.c.b16 %v1097, %v1096
    %v1146 = vpack.c.b16 %v1099, %v1098
    %v1147 = vpack.c.b16 %v1101, %v1100
    %v1148 = vpack.c.b16 %v1103, %v1102
    %v1149 = vpack.c.b16 %v1105, %v1104
    %v1150 = vpack.c.b16 %v1107, %v1106
    %v1151 = vpack.c.b16 %v1109, %v1108
    %v1152 = vpack.c.b16 %v1111, %v1110
    %v1153 = vpack.c.b16 %v1113, %v1112
    %v1154 = vpack.c.b16 %v1115, %v1114
    %v1155 = vpack.c.b16 %v1117, %v1116
    %v1156 = vpack.c.b16 %v1119, %v1118
    %v1157 = vpack.c.b16 %v1121, %v1120
    %v1158 = vpack.c.b16 %v1123, %v1122
    %v1159 = vpack.c.b16 %v1125, %v1124
    %v1160 = vpack.c.b16 %v1127, %v1126
    %v1161 = vpack.c.b16 %v1129, %v1128
    %1194 = vmatprep.subr.bf16.mxu0 0
    %1195 = vmatpush1.bf16.msra.mxu0 %v1130
    %1196 = vmatprep.subr.bf16.mxu0 0
    %1197 = vmatpush1.bf16.msra.mxu0 %v1131
    %1198 = vmatprep.subr.bf16.mxu0 0
    %1199 = vmatpush1.bf16.msra.mxu0 %v1132
    %1200 = vmatprep.subr.bf16.mxu0 0
    %1201 = vmatpush1.bf16.msra.mxu0 %v1133
    %1202 = vmatprep.subr.bf16.mxu0 0
    %1203 = vmatpush1.bf16.msra.mxu0 %v1134
    %1204 = vmatprep.subr.bf16.mxu0 0
    %1205 = vmatpush1.bf16.msra.mxu0 %v1135
    %1206 = vmatprep.subr.bf16.mxu0 0
    %1207 = vmatpush1.bf16.msra.mxu0 %v1136
    %1208 = vmatprep.subr.bf16.mxu0 0
    %1209 = vmatpush1.bf16.msra.mxu0 %v1137
    %1210 = vmatprep.subr.bf16.mxu0 0
    %1211 = vmatpush1.bf16.msra.mxu0 %v1138
    %1212 = vmatprep.subr.bf16.mxu0 0
    %1213 = vmatpush1.bf16.msra.mxu0 %v1139
    %1214 = vmatprep.subr.bf16.mxu0 0
    %1215 = vmatpush1.bf16.msra.mxu0 %v1140
    %1216 = vmatprep.subr.bf16.mxu0 0
    %1217 = vmatpush1.bf16.msra.mxu0 %v1141
    %1218 = vmatprep.subr.bf16.mxu0 0
    %1219 = vmatpush1.bf16.msra.mxu0 %v1142
    %1220 = vmatprep.subr.bf16.mxu0 0
    %1221 = vmatpush1.bf16.msra.mxu0 %v1143
    %1222 = vmatprep.subr.bf16.mxu0 0
    %1223 = vmatpush1.bf16.msra.mxu0 %v1144
    %1224 = vmatprep.subr.bf16.mxu0 0
    %1225 = vmatpush1.bf16.msra.mxu0 %v1145
    %1226 = vmatprep.mubr.bf16.mxu0 %v995
    %1227 = vmatmul.mubr.bf16.gmra.mrb[0].mxu0 %v994
    %v1228 = vpop.f32.mrb[0].mxu0
    %v1229 = vadd.f32 %v171, %v1228
    %v1230 = vpop.f32.mrb[0].mxu0
    %v1231 = vpop.f32.mrb[0].mxu0
    %v1232 = vpop.f32.mrb[0].mxu0
    %1233 = vdwg.mxu0
    %1234 = vmatprep.subr.bf16.mxu0 0
    %1235 = vmatpush1.bf16.msra.mxu0 %v1146
    %1236 = vmatprep.subr.bf16.mxu0 0
    %1237 = vmatpush1.bf16.msra.mxu0 %v1147
    %1238 = vmatprep.subr.bf16.mxu0 0
    %1239 = vmatpush1.bf16.msra.mxu0 %v1148
    %1240 = vmatprep.subr.bf16.mxu0 0
    %1241 = vmatpush1.bf16.msra.mxu0 %v1149
    %1242 = vmatprep.subr.bf16.mxu0 0
    %1243 = vmatpush1.bf16.msra.mxu0 %v1150
    %1244 = vmatprep.subr.bf16.mxu0 0
    %1245 = vmatpush1.bf16.msra.mxu0 %v1151
    %1246 = vmatprep.subr.bf16.mxu0 0
    %1247 = vmatpush1.bf16.msra.mxu0 %v1152
    %1248 = vmatprep.subr.bf16.mxu0 0
    %1249 = vmatpush1.bf16.msra.mxu0 %v1153
    %1250 = vmatprep.subr.bf16.mxu0 0
    %1251 = vmatpush1.bf16.msra.mxu0 %v1154
    %1252 = vmatprep.subr.bf16.mxu0 0
    %1253 = vmatpush1.bf16.msra.mxu0 %v1155
    %1254 = vmatprep.subr.bf16.mxu0 0
    %1255 = vmatpush1.bf16.msra.mxu0 %v1156
    %1256 = vmatprep.subr.bf16.mxu0 0
    %1257 = vmatpush1.bf16.msra.mxu0 %v1157
    %1258 = vmatprep.subr.bf16.mxu0 0
    %1259 = vmatpush1.bf16.msra.mxu0 %v1158
    %1260 = vmatprep.subr.bf16.mxu0 0
    %1261 = vmatpush1.bf16.msra.mxu0 %v1159
    %1262 = vmatprep.subr.bf16.mxu0 0
    %1263 = vmatpush1.bf16.msra.mxu0 %v1160
    %1264 = vmatprep.subr.bf16.mxu0 0
    %1265 = vmatpush1.bf16.msra.mxu0 %v1161
    %1266 = vmatprep.mubr.bf16.mxu0 %v997
    %1267 = vmatmul.mubr.bf16.gmra.mrb[0].mxu0 %v996
    %v1268 = vpop.f32.mrb[0].mxu0
    %v1269 = vadd.f32 %v1229, %v1268
    %v1270 = vpop.f32.mrb[0].mxu0
    %v1271 = vpop.f32.mrb[0].mxu0
    %v1272 = vpop.f32.mrb[0].mxu0
    %1273 = vdwg.mxu0
    %vm1274 = vcmp.gt.f32.partialorder %v1269, 0.0
    %v1275 = vmin.f32 %v1269, 0.0
    %v1276 = vmul.f32 %v1275, 1.442695
    %v1277 = vpow.pop %v1276
    %v1278 = vsub.f32 %v1277, 1.0
    %v1279 = vsel %vm1274, %v1269, %v1278
    %v1280 = vpack.c.bf16 %v1279, %v1279
    %1281 = vst [vmem:[#allocation3] sm:$0xf] %v1280
    %v1282 = vld [vmem:[#allocation2 + $0x8] sm:$0xff]
    %v1283 = vld [vmem:[#allocation2 + $0x10] sm:$0xff]
    %v1284 = vld [vmem:[#allocation2 + $0x18] sm:$0xff]
    %v1288 = vunpack.c.l.b16 %v1282
    %v1289 = vunpack.c.h.b16 %v1282
    %v1290 = vunpack.c.l.b16 %v1283
    %v1291 = vunpack.c.h.b16 %v1283
    %v1292 = vunpack.c.l.b16 %v1284
    %v1293 = vunpack.c.h.b16 %v1284
    %v1294 = vpack.c.b16 %v1288, %v1288
    %v1295 = vpack.c.b16 %v1289, %v1289
    %v1296 = vpack.c.b16 %v1290, %v1290
    %v1297 = vpack.c.b16 %v1291, %v1291
    %v1298 = vpack.c.b16 %v1292, %v1292
    %v1299 = vpack.c.b16 %v1293, %v1293
    %v1338 = vunpack.c.l.b16 %v70
    %v1339 = vunpack.c.l.b16 %v71
    %v1340 = vunpack.c.l.b16 %v72
    %v1341 = vunpack.c.l.b16 %v73
    %v1342 = vunpack.c.l.b16 %v74
    %v1343 = vunpack.c.l.b16 %v75
    %v1344 = vunpack.c.l.b16 %v76
    %v1345 = vunpack.c.l.b16 %v77
    %v1346 = vunpack.c.l.b16 %v78
    %v1347 = vunpack.c.l.b16 %v79
    %v1348 = vunpack.c.l.b16 %v80
    %v1349 = vunpack.c.l.b16 %v81
    %v1350 = vunpack.c.l.b16 %v82
    %v1351 = vunpack.c.l.b16 %v83
    %v1352 = vunpack.c.l.b16 %v84
    %v1353 = vunpack.c.l.b16 %v85
    %v1354 = vunpack.c.l.b16 %v86
    %v1355 = vunpack.c.l.b16 %v87
    %v1356 = vunpack.c.l.b16 %v88
    %v1357 = vunpack.c.l.b16 %v89
    %v1358 = vunpack.c.l.b16 %v90
    %v1359 = vunpack.c.l.b16 %v91
    %v1360 = vunpack.c.l.b16 %v92
    %v1361 = vunpack.c.l.b16 %v93
    %v1362 = vunpack.c.l.b16 %v94
    %v1363 = vunpack.c.l.b16 %v95
    %v1364 = vunpack.c.l.b16 %v96
    %v1365 = vunpack.c.l.b16 %v97
    %v1366 = vunpack.c.l.b16 %v98
    %v1367 = vunpack.c.l.b16 %v99
    %v1368 = vunpack.c.l.b16 %v100
    %v1369 = vunpack.c.l.b16 %v101
    %v1370 = vpack.c.b16 %v1339, %v1338
    %v1371 = vpack.c.b16 %v1341, %v1340
    %v1372 = vpack.c.b16 %v1343, %v1342
    %v1373 = vpack.c.b16 %v1345, %v1344
    %v1374 = vpack.c.b16 %v1347, %v1346
    %v1375 = vpack.c.b16 %v1349, %v1348
    %v1376 = vpack.c.b16 %v1351, %v1350
    %v1377 = vpack.c.b16 %v1353, %v1352
    %v1378 = vpack.c.b16 %v1355, %v1354
    %v1379 = vpack.c.b16 %v1357, %v1356
    %v1380 = vpack.c.b16 %v1359, %v1358
    %v1381 = vpack.c.b16 %v1361, %v1360
    %v1382 = vpack.c.b16 %v1363, %v1362
    %v1383 = vpack.c.b16 %v1365, %v1364
    %v1384 = vpack.c.b16 %v1367, %v1366
    %v1385 = vpack.c.b16 %v1369, %v1368
    %1402 = vmatprep.subr.bf16.mxu0 0
    %1403 = vmatpush1.bf16.msra.mxu0 %v1370
    %1404 = vmatprep.subr.bf16.mxu0 0
    %1405 = vmatpush1.bf16.msra.mxu0 %v1371
    %1406 = vmatprep.subr.bf16.mxu0 0
    %1407 = vmatpush1.bf16.msra.mxu0 %v1372
    %1408 = vmatprep.subr.bf16.mxu0 0
    %1409 = vmatpush1.bf16.msra.mxu0 %v1373
    %1410 = vmatprep.subr.bf16.mxu0 0
    %1411 = vmatpush1.bf16.msra.mxu0 %v1374
    %1412 = vmatprep.subr.bf16.mxu0 0
    %1413 = vmatpush1.bf16.msra.mxu0 %v1375
    %1414 = vmatprep.subr.bf16.mxu0 0
    %1415 = vmatpush1.bf16.msra.mxu0 %v1376
    %1416 = vmatprep.subr.bf16.mxu0 0
    %1417 = vmatpush1.bf16.msra.mxu0 %v1377
    %1418 = vmatprep.subr.bf16.mxu0 0
    %1419 = vmatpush1.bf16.msra.mxu0 %v1378
    %1420 = vmatprep.subr.bf16.mxu0 0
    %1421 = vmatpush1.bf16.msra.mxu0 %v1379
    %1422 = vmatprep.subr.bf16.mxu0 0
    %1423 = vmatpush1.bf16.msra.mxu0 %v1380
    %1424 = vmatprep.subr.bf16.mxu0 0
    %1425 = vmatpush1.bf16.msra.mxu0 %v1381
    %1426 = vmatprep.subr.bf16.mxu0 0
    %1427 = vmatpush1.bf16.msra.mxu0 %v1382
    %1428 = vmatprep.subr.bf16.mxu0 0
    %1429 = vmatpush1.bf16.msra.mxu0 %v1383
    %1430 = vmatprep.subr.bf16.mxu0 0
    %1431 = vmatpush1.bf16.msra.mxu0 %v1384
    %1432 = vmatprep.subr.bf16.mxu0 0
    %1433 = vmatpush1.bf16.msra.mxu0 %v1385
    %1434 = vmatprep.mubr.bf16.mxu0 %v1295
    %1435 = vmatmul.mubr.bf16.gmra.mrb[0].mxu0 %v1294
    %v1436 = vpop.f32.mrb[0].mxu0
    %v1437 = vadd.f32 %v171, %v1436
    %v1438 = vpop.f32.mrb[0].mxu0
    %v1439 = vpop.f32.mrb[0].mxu0
    %v1440 = vpop.f32.mrb[0].mxu0
    %1441 = vdwg.mxu0
    %1442 = vmatprep.subr.bf16.mxu0 0
    %1443 = vmatpush1.bf16.msra.mxu0 %v1130
    %1444 = vmatprep.subr.bf16.mxu0 0
    %1445 = vmatpush1.bf16.msra.mxu0 %v1131
    %1446 = vmatprep.subr.bf16.mxu0 0
    %1447 = vmatpush1.bf16.msra.mxu0 %v1132
    %1448 = vmatprep.subr.bf16.mxu0 0
    %1449 = vmatpush1.bf16.msra.mxu0 %v1133
    %1450 = vmatprep.subr.bf16.mxu0 0
    %1451 = vmatpush1.bf16.msra.mxu0 %v1134
    %1452 = vmatprep.subr.bf16.mxu0 0
    %1453 = vmatpush1.bf16.msra.mxu0 %v1135
    %1454 = vmatprep.subr.bf16.mxu0 0
    %1455 = vmatpush1.bf16.msra.mxu0 %v1136
    %1456 = vmatprep.subr.bf16.mxu0 0
    %1457 = vmatpush1.bf16.msra.mxu0 %v1137
    %1458 = vmatprep.subr.bf16.mxu0 0
    %1459 = vmatpush1.bf16.msra.mxu0 %v1138
    %1460 = vmatprep.subr.bf16.mxu0 0
    %1461 = vmatpush1.bf16.msra.mxu0 %v1139
    %1462 = vmatprep.subr.bf16.mxu0 0
    %1463 = vmatpush1.bf16.msra.mxu0 %v1140
    %1464 = vmatprep.subr.bf16.mxu0 0
    %1465 = vmatpush1.bf16.msra.mxu0 %v1141
    %1466 = vmatprep.subr.bf16.mxu0 0
    %1467 = vmatpush1.bf16.msra.mxu0 %v1142
    %1468 = vmatprep.subr.bf16.mxu0 0
    %1469 = vmatpush1.bf16.msra.mxu0 %v1143
    %1470 = vmatprep.subr.bf16.mxu0 0
    %1471 = vmatpush1.bf16.msra.mxu0 %v1144
    %1472 = vmatprep.subr.bf16.mxu0 0
    %1473 = vmatpush1.bf16.msra.mxu0 %v1145
    %1474 = vmatprep.mubr.bf16.mxu0 %v1297
    %1475 = vmatmul.mubr.bf16.gmra.mrb[0].mxu0 %v1296
    %v1476 = vpop.f32.mrb[0].mxu0
    %v1477 = vadd.f32 %v1437, %v1476
    %v1478 = vpop.f32.mrb[0].mxu0
    %v1479 = vpop.f32.mrb[0].mxu0
    %v1480 = vpop.f32.mrb[0].mxu0
    %1481 = vdwg.mxu0
    %1482 = vmatprep.subr.bf16.mxu0 0
    %1483 = vmatpush1.bf16.msra.mxu0 %v1146
    %1484 = vmatprep.subr.bf16.mxu0 0
    %1485 = vmatpush1.bf16.msra.mxu0 %v1147
    %1486 = vmatprep.subr.bf16.mxu0 0
    %1487 = vmatpush1.bf16.msra.mxu0 %v1148
    %1488 = vmatprep.subr.bf16.mxu0 0
    %1489 = vmatpush1.bf16.msra.mxu0 %v1149
    %1490 = vmatprep.subr.bf16.mxu0 0
    %1491 = vmatpush1.bf16.msra.mxu0 %v1150
    %1492 = vmatprep.subr.bf16.mxu0 0
    %1493 = vmatpush1.bf16.msra.mxu0 %v1151
    %1494 = vmatprep.subr.bf16.mxu0 0
    %1495 = vmatpush1.bf16.msra.mxu0 %v1152
    %1496 = vmatprep.subr.bf16.mxu0 0
    %1497 = vmatpush1.bf16.msra.mxu0 %v1153
    %1498 = vmatprep.subr.bf16.mxu0 0
    %1499 = vmatpush1.bf16.msra.mxu0 %v1154
    %1500 = vmatprep.subr.bf16.mxu0 0
    %1501 = vmatpush1.bf16.msra.mxu0 %v1155
    %1502 = vmatprep.subr.bf16.mxu0 0
    %1503 = vmatpush1.bf16.msra.mxu0 %v1156
    %1504 = vmatprep.subr.bf16.mxu0 0
    %1505 = vmatpush1.bf16.msra.mxu0 %v1157
    %1506 = vmatprep.subr.bf16.mxu0 0
    %1507 = vmatpush1.bf16.msra.mxu0 %v1158
    %1508 = vmatprep.subr.bf16.mxu0 0
    %1509 = vmatpush1.bf16.msra.mxu0 %v1159
    %1510 = vmatprep.subr.bf16.mxu0 0
    %1511 = vmatpush1.bf16.msra.mxu0 %v1160
    %1512 = vmatprep.subr.bf16.mxu0 0
    %1513 = vmatpush1.bf16.msra.mxu0 %v1161
    %1514 = vmatprep.mubr.bf16.mxu0 %v1299
    %1515 = vmatmul.mubr.bf16.gmra.mrb[0].mxu0 %v1298
    %v1516 = vpop.f32.mrb[0].mxu0
    %v1517 = vadd.f32 %v1477, %v1516
    %v1518 = vpop.f32.mrb[0].mxu0
    %v1519 = vpop.f32.mrb[0].mxu0
    %v1520 = vpop.f32.mrb[0].mxu0
    %1521 = vdwg.mxu0
    %vm1522 = vcmp.gt.f32.partialorder %v1517, 0.0
    %v1523 = vmin.f32 %v1517, 0.0
    %v1524 = vmul.f32 %v1523, 1.442695
    %v1525 = vpow.pop %v1524
    %v1526 = vsub.f32 %v1525, 1.0
    %v1527 = vsel %vm1522, %v1517, %v1526
    %v1528 = vpack.c.bf16 %v1527, %v1527
    %1529 = vst [vmem:[#allocation3 + $0x4] sm:$0xf] %v1528
    %v1530 = vld [vmem:[#allocation2 + $0x18] sm:$0xff]
    %v1531 = vld [vmem:[#allocation2 + $0x20] sm:$0xff]
    %v1532 = vld [vmem:[#allocation2 + $0x28] sm:$0xff]
    %v1536 = vunpack.c.l.b16 %v1530
    %v1537 = vunpack.c.h.b16 %v1530
    %v1538 = vunpack.c.l.b16 %v1531
    %v1539 = vunpack.c.h.b16 %v1531
    %v1540 = vunpack.c.l.b16 %v1532
    %v1541 = vunpack.c.h.b16 %v1532
    %v1542 = vpack.c.b16 %v1536, %v1536
    %v1543 = vpack.c.b16 %v1537, %v1537
    %v1544 = vpack.c.b16 %v1538, %v1538
    %v1545 = vpack.c.b16 %v1539, %v1539
    %v1546 = vpack.c.b16 %v1540, %v1540
    %v1547 = vpack.c.b16 %v1541, %v1541
    %1554 = vmatprep.subr.bf16.mxu0 0
    %1555 = vmatpush1.bf16.msra.mxu0 %v1370
    %1556 = vmatprep.subr.bf16.mxu0 0
    %1557 = vmatpush1.bf16.msra.mxu0 %v1371
    %1558 = vmatprep.subr.bf16.mxu0 0
    %1559 = vmatpush1.bf16.msra.mxu0 %v1372
    %1560 = vmatprep.subr.bf16.mxu0 0
    %1561 = vmatpush1.bf16.msra.mxu0 %v1373
    %1562 = vmatprep.subr.bf16.mxu0 0
    %1563 = vmatpush1.bf16.msra.mxu0 %v1374
    %1564 = vmatprep.subr.bf16.mxu0 0
    %1565 = vmatpush1.bf16.msra.mxu0 %v1375
    %1566 = vmatprep.subr.bf16.mxu0 0
    %1567 = vmatpush1.bf16.msra.mxu0 %v1376
    %1568 = vmatprep.subr.bf16.mxu0 0
    %1569 = vmatpush1.bf16.msra.mxu0 %v1377
    %1570 = vmatprep.subr.bf16.mxu0 0
    %1571 = vmatpush1.bf16.msra.mxu0 %v1378
    %1572 = vmatprep.subr.bf16.mxu0 0
    %1573 = vmatpush1.bf16.msra.mxu0 %v1379
    %1574 = vmatprep.subr.bf16.mxu0 0
    %1575 = vmatpush1.bf16.msra.mxu0 %v1380
    %1576 = vmatprep.subr.bf16.mxu0 0
    %1577 = vmatpush1.bf16.msra.mxu0 %v1381
    %1578 = vmatprep.subr.bf16.mxu0 0
    %1579 = vmatpush1.bf16.msra.mxu0 %v1382
    %1580 = vmatprep.subr.bf16.mxu0 0
    %1581 = vmatpush1.bf16.msra.mxu0 %v1383
    %1582 = vmatprep.subr.bf16.mxu0 0
    %1583 = vmatpush1.bf16.msra.mxu0 %v1384
    %1584 = vmatprep.subr.bf16.mxu0 0
    %1585 = vmatpush1.bf16.msra.mxu0 %v1385
    %1586 = vmatprep.mubr.bf16.mxu0 %v1543
    %1587 = vmatmul.mubr.bf16.gmra.mrb[0].mxu0 %v1542
    %v1588 = vpop.f32.mrb[0].mxu0
    %v1589 = vadd.f32 %v171, %v1588
    %v1590 = vpop.f32.mrb[0].mxu0
    %v1591 = vpop.f32.mrb[0].mxu0
    %v1592 = vpop.f32.mrb[0].mxu0
    %1593 = vdwg.mxu0
    %1594 = vmatprep.subr.bf16.mxu0 0
    %1595 = vmatpush1.bf16.msra.mxu0 %v1130
    %1596 = vmatprep.subr.bf16.mxu0 0
    %1597 = vmatpush1.bf16.msra.mxu0 %v1131
    %1598 = vmatprep.subr.bf16.mxu0 0
    %1599 = vmatpush1.bf16.msra.mxu0 %v1132
    %1600 = vmatprep.subr.bf16.mxu0 0
    %1601 = vmatpush1.bf16.msra.mxu0 %v1133
    %1602 = vmatprep.subr.bf16.mxu0 0
    %1603 = vmatpush1.bf16.msra.mxu0 %v1134
    %1604 = vmatprep.subr.bf16.mxu0 0
    %1605 = vmatpush1.bf16.msra.mxu0 %v1135
    %1606 = vmatprep.subr.bf16.mxu0 0
    %1607 = vmatpush1.bf16.msra.mxu0 %v1136
    %1608 = vmatprep.subr.bf16.mxu0 0
    %1609 = vmatpush1.bf16.msra.mxu0 %v1137
    %1610 = vmatprep.subr.bf16.mxu0 0
    %1611 = vmatpush1.bf16.msra.mxu0 %v1138
    %1612 = vmatprep.subr.bf16.mxu0 0
    %1613 = vmatpush1.bf16.msra.mxu0 %v1139
    %1614 = vmatprep.subr.bf16.mxu0 0
    %1615 = vmatpush1.bf16.msra.mxu0 %v1140
    %1616 = vmatprep.subr.bf16.mxu0 0
    %1617 = vmatpush1.bf16.msra.mxu0 %v1141
    %1618 = vmatprep.subr.bf16.mxu0 0
    %1619 = vmatpush1.bf16.msra.mxu0 %v1142
    %1620 = vmatprep.subr.bf16.mxu0 0
    %1621 = vmatpush1.bf16.msra.mxu0 %v1143
    %1622 = vmatprep.subr.bf16.mxu0 0
    %1623 = vmatpush1.bf16.msra.mxu0 %v1144
    %1624 = vmatprep.subr.bf16.mxu0 0
    %1625 = vmatpush1.bf16.msra.mxu0 %v1145
    %1626 = vmatprep.mubr.bf16.mxu0 %v1545
    %1627 = vmatmul.mubr.bf16.gmra.mrb[0].mxu0 %v1544
    %v1628 = vpop.f32.mrb[0].mxu0
    %v1629 = vadd.f32 %v1589, %v1628
    %v1630 = vpop.f32.mrb[0].mxu0
    %v1631 = vpop.f32.mrb[0].mxu0
    %v1632 = vpop.f32.mrb[0].mxu0
    %1633 = vdwg.mxu0
    %1634 = vmatprep.subr.bf16.mxu0 0
    %1635 = vmatpush1.bf16.msra.mxu0 %v1146
    %1636 = vmatprep.subr.bf16.mxu0 0
    %1637 = vmatpush1.bf16.msra.mxu0 %v1147
    %1638 = vmatprep.subr.bf16.mxu0 0
    %1639 = vmatpush1.bf16.msra.mxu0 %v1148
    %1640 = vmatprep.subr.bf16.mxu0 0
    %1641 = vmatpush1.bf16.msra.mxu0 %v1149
    %1642 = vmatprep.subr.bf16.mxu0 0
    %1643 = vmatpush1.bf16.msra.mxu0 %v1150
    %1644 = vmatprep.subr.bf16.mxu0 0
    %1645 = vmatpush1.bf16.msra.mxu0 %v1151
    %1646 = vmatprep.subr.bf16.mxu0 0
    %1647 = vmatpush1.bf16.msra.mxu0 %v1152
    %1648 = vmatprep.subr.bf16.mxu0 0
    %1649 = vmatpush1.bf16.msra.mxu0 %v1153
    %1650 = vmatprep.subr.bf16.mxu0 0
    %1651 = vmatpush1.bf16.msra.mxu0 %v1154
    %1652 = vmatprep.subr.bf16.mxu0 0
    %1653 = vmatpush1.bf16.msra.mxu0 %v1155
    %1654 = vmatprep.subr.bf16.mxu0 0
    %1655 = vmatpush1.bf16.msra.mxu0 %v1156
    %1656 = vmatprep.subr.bf16.mxu0 0
    %1657 = vmatpush1.bf16.msra.mxu0 %v1157
    %1658 = vmatprep.subr.bf16.mxu0 0
    %1659 = vmatpush1.bf16.msra.mxu0 %v1158
    %1660 = vmatprep.subr.bf16.mxu0 0
    %1661 = vmatpush1.bf16.msra.mxu0 %v1159
    %1662 = vmatprep.subr.bf16.mxu0 0
    %1663 = vmatpush1.bf16.msra.mxu0 %v1160
    %1664 = vmatprep.subr.bf16.mxu0 0
    %1665 = vmatpush1.bf16.msra.mxu0 %v1161
    %1666 = vmatprep.mubr.bf16.mxu0 %v1547
    %1667 = vmatmul.mubr.bf16.gmra.mrb[0].mxu0 %v1546
    %v1668 = vpop.f32.mrb[0].mxu0
    %v1669 = vadd.f32 %v1629, %v1668
    %v1670 = vpop.f32.mrb[0].mxu0
    %v1671 = vpop.f32.mrb[0].mxu0
    %v1672 = vpop.f32.mrb[0].mxu0
    %1673 = vdwg.mxu0
    %vm1674 = vcmp.gt.f32.partialorder %v1669, 0.0
    %v1675 = vmin.f32 %v1669, 0.0
    %v1676 = vmul.f32 %v1675, 1.442695
    %v1677 = vpow.pop %v1676
    %v1678 = vsub.f32 %v1677, 1.0
    %v1679 = vsel %vm1674, %v1669, %v1678
    %v1680 = vpack.c.bf16 %v1679, %v1679
    %1681 = vst [vmem:[#allocation3 + $0x8] sm:$0xf] %v1680
    %v1682 = vld [vmem:[#allocation2 + $0x28] sm:$0xff]
    %v1683 = vld [vmem:[#allocation2 + $0x30] sm:$0xff]
    %v1684 = vld [vmem:[#allocation2 + $0x38] sm:$0xff]
    %v1688 = vunpack.c.l.b16 %v1682
    %v1689 = vunpack.c.h.b16 %v1682
    %v1690 = vunpack.c.l.b16 %v1683
    %v1691 = vunpack.c.h.b16 %v1683
    %v1692 = vunpack.c.l.b16 %v1684
    %v1693 = vunpack.c.h.b16 %v1684
    %v1694 = vpack.c.b16 %v1688, %v1688
    %v1695 = vpack.c.b16 %v1689, %v1689
    %v1696 = vpack.c.b16 %v1690, %v1690
    %v1697 = vpack.c.b16 %v1691, %v1691
    %v1698 = vpack.c.b16 %v1692, %v1692
    %v1699 = vpack.c.b16 %v1693, %v1693
    %1706 = vmatprep.subr.bf16.mxu0 0
    %1707 = vmatpush1.bf16.msra.mxu0 %v1370
    %1708 = vmatprep.subr.bf16.mxu0 0
    %1709 = vmatpush1.bf16.msra.mxu0 %v1371
    %1710 = vmatprep.subr.bf16.mxu0 0
    %1711 = vmatpush1.bf16.msra.mxu0 %v1372
    %1712 = vmatprep.subr.bf16.mxu0 0
    %1713 = vmatpush1.bf16.msra.mxu0 %v1373
    %1714 = vmatprep.subr.bf16.mxu0 0
    %1715 = vmatpush1.bf16.msra.mxu0 %v1374
    %1716 = vmatprep.subr.bf16.mxu0 0
    %1717 = vmatpush1.bf16.msra.mxu0 %v1375
    %1718 = vmatprep.subr.bf16.mxu0 0
    %1719 = vmatpush1.bf16.msra.mxu0 %v1376
    %1720 = vmatprep.subr.bf16.mxu0 0
    %1721 = vmatpush1.bf16.msra.mxu0 %v1377
    %1722 = vmatprep.subr.bf16.mxu0 0
    %1723 = vmatpush1.bf16.msra.mxu0 %v1378
    %1724 = vmatprep.subr.bf16.mxu0 0
    %1725 = vmatpush1.bf16.msra.mxu0 %v1379
    %1726 = vmatprep.subr.bf16.mxu0 0
    %1727 = vmatpush1.bf16.msra.mxu0 %v1380
    %1728 = vmatprep.subr.bf16.mxu0 0
    %1729 = vmatpush1.bf16.msra.mxu0 %v1381
    %1730 = vmatprep.subr.bf16.mxu0 0
    %1731 = vmatpush1.bf16.msra.mxu0 %v1382
    %1732 = vmatprep.subr.bf16.mxu0 0
    %1733 = vmatpush1.bf16.msra.mxu0 %v1383
    %1734 = vmatprep.subr.bf16.mxu0 0
    %1735 = vmatpush1.bf16.msra.mxu0 %v1384
    %1736 = vmatprep.subr.bf16.mxu0 0
    %1737 = vmatpush1.bf16.msra.mxu0 %v1385
    %1738 = vmatprep.mubr.bf16.mxu0 %v1695
    %1739 = vmatmul.mubr.bf16.gmra.mrb[0].mxu0 %v1694
    %v1740 = vpop.f32.mrb[0].mxu0
    %v1741 = vadd.f32 %v171, %v1740
    %v1742 = vpop.f32.mrb[0].mxu0
    %v1743 = vpop.f32.mrb[0].mxu0
    %v1744 = vpop.f32.mrb[0].mxu0
    %1745 = vdwg.mxu0
    %1746 = vmatprep.subr.bf16.mxu0 0
    %1747 = vmatpush1.bf16.msra.mxu0 %v1130
    %1748 = vmatprep.subr.bf16.mxu0 0
    %1749 = vmatpush1.bf16.msra.mxu0 %v1131
    %1750 = vmatprep.subr.bf16.mxu0 0
    %1751 = vmatpush1.bf16.msra.mxu0 %v1132
    %1752 = vmatprep.subr.bf16.mxu0 0
    %1753 = vmatpush1.bf16.msra.mxu0 %v1133
    %1754 = vmatprep.subr.bf16.mxu0 0
    %1755 = vmatpush1.bf16.msra.mxu0 %v1134
    %1756 = vmatprep.subr.bf16.mxu0 0
    %1757 = vmatpush1.bf16.msra.mxu0 %v1135
    %1758 = vmatprep.subr.bf16.mxu0 0
    %1759 = vmatpush1.bf16.msra.mxu0 %v1136
    %1760 = vmatprep.subr.bf16.mxu0 0
    %1761 = vmatpush1.bf16.msra.mxu0 %v1137
    %1762 = vmatprep.subr.bf16.mxu0 0
    %1763 = vmatpush1.bf16.msra.mxu0 %v1138
    %1764 = vmatprep.subr.bf16.mxu0 0
    %1765 = vmatpush1.bf16.msra.mxu0 %v1139
    %1766 = vmatprep.subr.bf16.mxu0 0
    %1767 = vmatpush1.bf16.msra.mxu0 %v1140
    %1768 = vmatprep.subr.bf16.mxu0 0
    %1769 = vmatpush1.bf16.msra.mxu0 %v1141
    %1770 = vmatprep.subr.bf16.mxu0 0
    %1771 = vmatpush1.bf16.msra.mxu0 %v1142
    %1772 = vmatprep.subr.bf16.mxu0 0
    %1773 = vmatpush1.bf16.msra.mxu0 %v1143
    %1774 = vmatprep.subr.bf16.mxu0 0
    %1775 = vmatpush1.bf16.msra.mxu0 %v1144
    %1776 = vmatprep.subr.bf16.mxu0 0
    %1777 = vmatpush1.bf16.msra.mxu0 %v1145
    %1778 = vmatprep.mubr.bf16.mxu0 %v1697
    %1779 = vmatmul.mubr.bf16.gmra.mrb[0].mxu0 %v1696
    %v1780 = vpop.f32.mrb[0].mxu0
    %v1781 = vadd.f32 %v1741, %v1780
    %v1782 = vpop.f32.mrb[0].mxu0
    %v1783 = vpop.f32.mrb[0].mxu0
    %v1784 = vpop.f32.mrb[0].mxu0
    %1785 = vdwg.mxu0
    %1786 = vmatprep.subr.bf16.mxu0 0
    %1787 = vmatpush1.bf16.msra.mxu0 %v1146
    %1788 = vmatprep.subr.bf16.mxu0 0
    %1789 = vmatpush1.bf16.msra.mxu0 %v1147
    %1790 = vmatprep.subr.bf16.mxu0 0
    %1791 = vmatpush1.bf16.msra.mxu0 %v1148
    %1792 = vmatprep.subr.bf16.mxu0 0
    %1793 = vmatpush1.bf16.msra.mxu0 %v1149
    %1794 = vmatprep.subr.bf16.mxu0 0
    %1795 = vmatpush1.bf16.msra.mxu0 %v1150
    %1796 = vmatprep.subr.bf16.mxu0 0
    %1797 = vmatpush1.bf16.msra.mxu0 %v1151
    %1798 = vmatprep.subr.bf16.mxu0 0
    %1799 = vmatpush1.bf16.msra.mxu0 %v1152
    %1800 = vmatprep.subr.bf16.mxu0 0
    %1801 = vmatpush1.bf16.msra.mxu0 %v1153
    %1802 = vmatprep.subr.bf16.mxu0 0
    %1803 = vmatpush1.bf16.msra.mxu0 %v1154
    %1804 = vmatprep.subr.bf16.mxu0 0
    %1805 = vmatpush1.bf16.msra.mxu0 %v1155
    %1806 = vmatprep.subr.bf16.mxu0 0
    %1807 = vmatpush1.bf16.msra.mxu0 %v1156
    %1808 = vmatprep.subr.bf16.mxu0 0
    %1809 = vmatpush1.bf16.msra.mxu0 %v1157
    %1810 = vmatprep.subr.bf16.mxu0 0
    %1811 = vmatpush1.bf16.msra.mxu0 %v1158
    %1812 = vmatprep.subr.bf16.mxu0 0
    %1813 = vmatpush1.bf16.msra.mxu0 %v1159
    %1814 = vmatprep.subr.bf16.mxu0 0
    %1815 = vmatpush1.bf16.msra.mxu0 %v1160
    %1816 = vmatprep.subr.bf16.mxu0 0
    %1817 = vmatpush1.bf16.msra.mxu0 %v1161
    %1818 = vmatprep.mubr.bf16.mxu0 %v1699
    %1819 = vmatmul.mubr.bf16.gmra.mrb[0].mxu0 %v1698
    %v1820 = vpop.f32.mrb[0].mxu0
    %v1821 = vadd.f32 %v1781, %v1820
    %v1822 = vpop.f32.mrb[0].mxu0
    %v1823 = vpop.f32.mrb[0].mxu0
    %v1824 = vpop.f32.mrb[0].mxu0
    %1825 = vdwg.mxu0
    %vm1826 = vcmp.gt.f32.partialorder %v1821, 0.0
    %v1827 = vmin.f32 %v1821, 0.0
    %v1828 = vmul.f32 %v1827, 1.442695
    %v1829 = vpow.pop %v1828
    %v1830 = vsub.f32 %v1829, 1.0
    %v1831 = vsel %vm1826, %v1821, %v1830
    %v1832 = vpack.c.bf16 %v1831, %v1831
    %1833 = vst [vmem:[#allocation3 + $0xc] sm:$0xf] %v1832
    %v1834 = vld [vmem:[#allocation3] sm:$0xff]
    %v1836 = vunpack.c.l.b16 %v1834
    %v1837 = vunpack.c.h.b16 %v1834
    %v1838 = vpack.c.b16 %v1836, %v1836
    %v1839 = vpack.c.b16 %v1837, %v1837
    %v1874 = vunpack.c.l.b16 %v189
    %v1875 = vunpack.c.l.b16 %v190
    %v1876 = vunpack.c.l.b16 %v191
    %v1877 = vunpack.c.l.b16 %v192
    %v1878 = vunpack.c.l.b16 %v193
    %v1879 = vunpack.c.l.b16 %v194
    %v1880 = vunpack.c.l.b16 %v195
    %v1881 = vunpack.c.l.b16 %v196
    %v1882 = vunpack.c.l.b16 %v197
    %v1883 = vunpack.c.l.b16 %v198
    %v1884 = vunpack.c.l.b16 %v199
    %v1885 = vunpack.c.l.b16 %v200
    %v1886 = vunpack.c.l.b16 %v201
    %v1887 = vunpack.c.l.b16 %v202
    %v1888 = vunpack.c.l.b16 %v203
    %v1889 = vunpack.c.l.b16 %v204
    %v1890 = vunpack.c.l.b16 %v205
    %v1891 = vunpack.c.l.b16 %v206
    %v1892 = vunpack.c.l.b16 %v207
    %v1893 = vunpack.c.l.b16 %v208
    %v1894 = vunpack.c.l.b16 %v209
    %v1895 = vunpack.c.l.b16 %v210
    %v1896 = vunpack.c.l.b16 %v211
    %v1897 = vunpack.c.l.b16 %v212
    %v1898 = vunpack.c.l.b16 %v213
    %v1899 = vunpack.c.l.b16 %v214
    %v1900 = vunpack.c.l.b16 %v215
    %v1901 = vunpack.c.l.b16 %v216
    %v1902 = vunpack.c.l.b16 %v217
    %v1903 = vunpack.c.l.b16 %v218
    %v1904 = vunpack.c.l.b16 %v219
    %v1905 = vunpack.c.l.b16 %v220
    %v1906 = vpack.c.b16 %v1875, %v1874
    %v1907 = vpack.c.b16 %v1877, %v1876
    %v1908 = vpack.c.b16 %v1879, %v1878
    %v1909 = vpack.c.b16 %v1881, %v1880
    %v1910 = vpack.c.b16 %v1883, %v1882
    %v1911 = vpack.c.b16 %v1885, %v1884
    %v1912 = vpack.c.b16 %v1887, %v1886
    %v1913 = vpack.c.b16 %v1889, %v1888
    %v1914 = vpack.c.b16 %v1891, %v1890
    %v1915 = vpack.c.b16 %v1893, %v1892
    %v1916 = vpack.c.b16 %v1895, %v1894
    %v1917 = vpack.c.b16 %v1897, %v1896
    %v1918 = vpack.c.b16 %v1899, %v1898
    %v1919 = vpack.c.b16 %v1901, %v1900
    %v1920 = vpack.c.b16 %v1903, %v1902
    %v1921 = vpack.c.b16 %v1905, %v1904
    %1938 = vmatprep.subr.bf16.mxu0 0
    %1939 = vmatpush1.bf16.msra.mxu0 %v1906
    %1940 = vmatprep.subr.bf16.mxu0 0
    %1941 = vmatpush1.bf16.msra.mxu0 %v1907
    %1942 = vmatprep.subr.bf16.mxu0 0
    %1943 = vmatpush1.bf16.msra.mxu0 %v1908
    %1944 = vmatprep.subr.bf16.mxu0 0
    %1945 = vmatpush1.bf16.msra.mxu0 %v1909
    %1946 = vmatprep.subr.bf16.mxu0 0
    %1947 = vmatpush1.bf16.msra.mxu0 %v1910
    %1948 = vmatprep.subr.bf16.mxu0 0
    %1949 = vmatpush1.bf16.msra.mxu0 %v1911
    %1950 = vmatprep.subr.bf16.mxu0 0
    %1951 = vmatpush1.bf16.msra.mxu0 %v1912
    %1952 = vmatprep.subr.bf16.mxu0 0
    %1953 = vmatpush1.bf16.msra.mxu0 %v1913
    %1954 = vmatprep.subr.bf16.mxu0 0
    %1955 = vmatpush1.bf16.msra.mxu0 %v1914
    %1956 = vmatprep.subr.bf16.mxu0 0
    %1957 = vmatpush1.bf16.msra.mxu0 %v1915
    %1958 = vmatprep.subr.bf16.mxu0 0
    %1959 = vmatpush1.bf16.msra.mxu0 %v1916
    %1960 = vmatprep.subr.bf16.mxu0 0
    %1961 = vmatpush1.bf16.msra.mxu0 %v1917
    %1962 = vmatprep.subr.bf16.mxu0 0
    %1963 = vmatpush1.bf16.msra.mxu0 %v1918
    %1964 = vmatprep.subr.bf16.mxu0 0
    %1965 = vmatpush1.bf16.msra.mxu0 %v1919
    %1966 = vmatprep.subr.bf16.mxu0 0
    %1967 = vmatpush1.bf16.msra.mxu0 %v1920
    %1968 = vmatprep.subr.bf16.mxu0 0
    %1969 = vmatpush1.bf16.msra.mxu0 %v1921
    %1970 = vmatprep.mubr.bf16.mxu0 %v1839
    %1971 = vmatmul.mubr.bf16.gmra.mrb[0].mxu0 %v1838
    %v1972 = vpop.f32.mrb[0].mxu0
    %v1973 = vadd.f32 %v226, %v1972
    %v1974 = vpop.f32.mrb[0].mxu0
    %v1975 = vpop.f32.mrb[0].mxu0
    %v1976 = vpop.f32.mrb[0].mxu0
    %1977 = vdwg.mxu0
    %vm1978 = vcmp.gt.f32.partialorder %v1973, 0.0
    %v1979 = vmin.f32 %v1973, 0.0
    %v1980 = vmul.f32 %v1979, 1.442695
    %v1981 = vpow.pop %v1980
    %v1982 = vsub.f32 %v1981, 1.0
    %v1983 = vsel %vm1978, %v1973, %v1982
    %v1984 = vpack.c.bf16 %v1983, %v1983
    %vm1985 = vcmask 519168
    %1986 = vst.msk [vmem:[#allocation4] sm:$0xf] %vm1985, %v1984
    %v1987 = vld [vmem:[#allocation3 + $0x4] sm:$0xff]
    %v1988 = vld [vmem:[#allocation3 + $0xc] sm:$0xf]
    %v1991 = vunpack.c.l.b16 %v1987
    %v1992 = vunpack.c.h.b16 %v1987
    %v1993 = vunpack.c.l.b16 %v1988
    %v1994 = vpack.c.b16 %v1991, %v1991
    %v1995 = vpack.c.b16 %v1992, %v1992
    %v1996 = vpack.c.b16 %v1993, %v1993
    %v2016 = vunpack.c.l.b16 %v173
    %v2017 = vunpack.c.l.b16 %v174
    %v2018 = vunpack.c.l.b16 %v175
    %v2019 = vunpack.c.l.b16 %v176
    %v2020 = vunpack.c.l.b16 %v177
    %v2021 = vunpack.c.l.b16 %v178
    %v2022 = vunpack.c.l.b16 %v179
    %v2023 = vunpack.c.l.b16 %v180
    %v2024 = vunpack.c.l.b16 %v181
    %v2025 = vunpack.c.l.b16 %v182
    %v2026 = vunpack.c.l.b16 %v183
    %v2027 = vunpack.c.l.b16 %v184
    %v2028 = vunpack.c.l.b16 %v185
    %v2029 = vunpack.c.l.b16 %v186
    %v2030 = vunpack.c.l.b16 %v187
    %v2031 = vunpack.c.l.b16 %v188
    %v2032 = vpack.c.b16 %v2017, %v2016
    %v2033 = vpack.c.b16 %v2019, %v2018
    %v2034 = vpack.c.b16 %v2021, %v2020
    %v2035 = vpack.c.b16 %v2023, %v2022
    %v2036 = vpack.c.b16 %v2025, %v2024
    %v2037 = vpack.c.b16 %v2027, %v2026
    %v2038 = vpack.c.b16 %v2029, %v2028
    %v2039 = vpack.c.b16 %v2031, %v2030
    %2048 = vmatprep.subr.bf16.mxu0 0
    %2049 = vmatpush1.bf16.msra.mxu0 %v2032
    %2050 = vmatprep.subr.bf16.mxu0 0
    %2051 = vmatpush1.bf16.msra.mxu0 %v2033
    %2052 = vmatprep.subr.bf16.mxu0 0
    %2053 = vmatpush1.bf16.msra.mxu0 %v2034
    %2054 = vmatprep.subr.bf16.mxu0 0
    %2055 = vmatpush1.bf16.msra.mxu0 %v2035
    %2056 = vmatprep.subr.bf16.mxu0 0
    %2057 = vmatpush1.bf16.msra.mxu0 %v2036
    %2058 = vmatprep.subr.bf16.mxu0 0
    %2059 = vmatpush1.bf16.msra.mxu0 %v2037
    %2060 = vmatprep.subr.bf16.mxu0 0
    %2061 = vmatpush1.bf16.msra.mxu0 %v2038
    %2062 = vmatprep.subr.bf16.mxu0 0
    %2063 = vmatpush1.bf16.msra.mxu0 %v2039
    %2064 = vmatprep.subr.bf16.mxu0 0
    %2065 = vmatpush1.bf16.msra.mxu0 %v1906
    %2066 = vmatprep.subr.bf16.mxu0 0
    %2067 = vmatpush1.bf16.msra.mxu0 %v1907
    %2068 = vmatprep.subr.bf16.mxu0 0
    %2069 = vmatpush1.bf16.msra.mxu0 %v1908
    %2070 = vmatprep.subr.bf16.mxu0 0
    %2071 = vmatpush1.bf16.msra.mxu0 %v1909
    %2072 = vmatprep.subr.bf16.mxu0 0
    %2073 = vmatpush1.bf16.msra.mxu0 %v1910
    %2074 = vmatprep.subr.bf16.mxu0 0
    %2075 = vmatpush1.bf16.msra.mxu0 %v1911
    %2076 = vmatprep.subr.bf16.mxu0 0
    %2077 = vmatpush1.bf16.msra.mxu0 %v1912
    %2078 = vmatprep.subr.bf16.mxu0 0
    %2079 = vmatpush1.bf16.msra.mxu0 %v1913
    %2080 = vmatprep.mubr.bf16.mxu0 %v1995
    %2081 = vmatmul.mubr.bf16.gmra.mrb[0].mxu0 %v1994
    %v2082 = vpop.f32.mrb[0].mxu0
    %v2083 = vadd.f32 %v226, %v2082
    %v2084 = vpop.f32.mrb[0].mxu0
    %v2085 = vpop.f32.mrb[0].mxu0
    %v2086 = vpop.f32.mrb[0].mxu0
    %2087 = vdwg.mxu0
    %2088 = vmatprep.subr.bf16.mxu0 0
    %2089 = vmatpush1.bf16.msra.mxu0 %v1914
    %2090 = vmatprep.subr.bf16.mxu0 0
    %2091 = vmatpush1.bf16.msra.mxu0 %v1915
    %2092 = vmatprep.subr.bf16.mxu0 0
    %2093 = vmatpush1.bf16.msra.mxu0 %v1916
    %2094 = vmatprep.subr.bf16.mxu0 0
    %2095 = vmatpush1.bf16.msra.mxu0 %v1917
    %2096 = vmatprep.subr.bf16.mxu0 0
    %2097 = vmatpush1.bf16.msra.mxu0 %v1918
    %2098 = vmatprep.subr.bf16.mxu0 0
    %2099 = vmatpush1.bf16.msra.mxu0 %v1919
    %2100 = vmatprep.subr.bf16.mxu0 0
    %2101 = vmatpush1.bf16.msra.mxu0 %v1920
    %2102 = vmatprep.subr.bf16.mxu0 0
    %2103 = vmatpush1.bf16.msra.mxu0 %v1921
    %2104 = vmatprep.subr.bf16.mxu0 0
    %2105 = vmatpush1.bf16.msra.mxu0 0
    %2106 = vmatprep.subr.bf16.mxu0 0
    %2107 = vmatpush1.bf16.msra.mxu0 0
    %2108 = vmatprep.subr.bf16.mxu0 0
    %2109 = vmatpush1.bf16.msra.mxu0 0
    %2110 = vmatprep.subr.bf16.mxu0 0
    %2111 = vmatpush1.bf16.msra.mxu0 0
    %2112 = vmatprep.subr.bf16.mxu0 0
    %2113 = vmatpush1.bf16.msra.mxu0 0
    %2114 = vmatprep.subr.bf16.mxu0 0
    %2115 = vmatpush1.bf16.msra.mxu0 0
    %2116 = vmatprep.subr.bf16.mxu0 0
    %2117 = vmatpush1.bf16.msra.mxu0 0
    %2118 = vmatprep.subr.bf16.mxu0 0
    %2119 = vmatpush1.bf16.msra.mxu0 0
    %2120 = vmatprep.mubr.bf16.mxu0 0
    %2121 = vmatmul.mubr.bf16.gmra.mrb[0].mxu0 %v1996
    %v2122 = vpop.f32.mrb[0].mxu0
    %v2123 = vadd.f32 %v2083, %v2122
    %v2124 = vpop.f32.mrb[0].mxu0
    %v2125 = vpop.f32.mrb[0].mxu0
    %v2126 = vpop.f32.mrb[0].mxu0
    %2127 = vdwg.mxu0
    %vm2128 = vcmp.gt.f32.partialorder %v2123, 0.0
    %v2129 = vmin.f32 %v2123, 0.0
    %v2130 = vmul.f32 %v2129, 1.442695
    %v2131 = vpow.pop %v2130
    %v2132 = vsub.f32 %v2131, 1.0
    %v2133 = vsel %vm2128, %v2123, %v2132
    %v2134 = vpack.c.bf16 %v2133, %v2133
    %v2136 = vunpack.c.l.b16 %v2134
    %v2137 = vpack.c.b16 %v2136, %v2136
    %2138 = vrot.lane.b32.xlu0 %v2137, 64
    %v2139 = vpop.permute.xlu0 %2138
    %vm2141 = vcmask 1043968
    %2142 = vst.msk [vmem:[#allocation4] sm:$0xf] %vm2141, %v2139
    %v2143 = vld [vmem:[#allocation4] sm:$0xf]
    %v2160 = vunpack.c.l.b16 %v228
    %v2161 = vunpack.c.l.b16 %v229
    %v2162 = vunpack.c.l.b16 %v230
    %v2163 = vunpack.c.l.b16 %v231
    %v2164 = vunpack.c.l.b16 %v232
    %v2165 = vunpack.c.l.b16 %v233
    %v2166 = vunpack.c.l.b16 %v234
    %v2167 = vunpack.c.l.b16 %v235
    %v2168 = vunpack.c.l.b16 %v236
    %v2169 = vunpack.c.l.b16 %v237
    %v2170 = vunpack.c.l.b16 %v238
    %v2171 = vunpack.c.l.b16 %v239
    %v2172 = vunpack.c.l.b16 %v240
    %v2173 = vunpack.c.l.b16 %v241
    %v2174 = vunpack.c.l.b16 %v242
    %v2175 = vunpack.c.l.b16 %v243
    %v2176 = vpack.c.b16 %v2161, %v2160
    %v2177 = vpack.c.b16 %v2163, %v2162
    %v2178 = vpack.c.b16 %v2165, %v2164
    %v2179 = vpack.c.b16 %v2167, %v2166
    %v2180 = vpack.c.b16 %v2169, %v2168
    %v2181 = vpack.c.b16 %v2171, %v2170
    %v2182 = vpack.c.b16 %v2173, %v2172
    %v2183 = vpack.c.b16 %v2175, %v2174
    %2192 = vmatprep.subr.bf16.mxu0 0
    %2193 = vmatpush1.bf16.msra.mxu0 %v2176
    %2194 = vmatprep.subr.bf16.mxu0 0
    %2195 = vmatpush1.bf16.msra.mxu0 %v2177
    %2196 = vmatprep.subr.bf16.mxu0 0
    %2197 = vmatpush1.bf16.msra.mxu0 %v2178
    %2198 = vmatprep.subr.bf16.mxu0 0
    %2199 = vmatpush1.bf16.msra.mxu0 %v2179
    %2200 = vmatprep.subr.bf16.mxu0 0
    %2201 = vmatpush1.bf16.msra.mxu0 %v2180
    %2202 = vmatprep.subr.bf16.mxu0 0
    %2203 = vmatpush1.bf16.msra.mxu0 %v2181
    %2204 = vmatprep.subr.bf16.mxu0 0
    %2205 = vmatpush1.bf16.msra.mxu0 %v2182
    %2206 = vmatprep.subr.bf16.mxu0 0
    %2207 = vmatpush1.bf16.msra.mxu0 %v2183
    %2208 = vmatprep.subr.bf16.mxu0 0
    %2209 = vmatpush1.bf16.msra.mxu0 0
    %2210 = vmatprep.subr.bf16.mxu0 0
    %2211 = vmatpush1.bf16.msra.mxu0 0
    %2212 = vmatprep.subr.bf16.mxu0 0
    %2213 = vmatpush1.bf16.msra.mxu0 0
    %2214 = vmatprep.subr.bf16.mxu0 0
    %2215 = vmatpush1.bf16.msra.mxu0 0
    %2216 = vmatprep.subr.bf16.mxu0 0
    %2217 = vmatpush1.bf16.msra.mxu0 0
    %2218 = vmatprep.subr.bf16.mxu0 0
    %2219 = vmatpush1.bf16.msra.mxu0 0
    %2220 = vmatprep.subr.bf16.mxu0 0
    %2221 = vmatpush1.bf16.msra.mxu0 0
    %2222 = vmatprep.subr.bf16.mxu0 0
    %2223 = vmatpush1.bf16.msra.mxu0 0
    %2224 = vmatprep.mubr.bf16.mxu0 0
    %2225 = vmatmul.mubr.bf16.gmra.mrb[0].mxu0 %v2143
    %v2226 = vpop.f32.mrb[0].mxu0
    %v2227 = vadd.f32 %v249, %v2226
    %v2228 = vpop.f32.mrb[0].mxu0
    %v2229 = vpop.f32.mrb[0].mxu0
    %v2230 = vpop.f32.mrb[0].mxu0
    %2231 = vdwg.mxu0
    %vm2232 = vcmp.gt.f32.partialorder %v2227, 0.0
    %v2233 = vmin.f32 %v2227, 0.0
    %v2234 = vmul.f32 %v2233, 1.442695
    %v2235 = vpow.pop %v2234
    %v2236 = vsub.f32 %v2235, 1.0
    %v2237 = vsel %vm2232, %v2227, %v2236
    %vm2238 = vcmask 261120
    %2239 = vst.msk [vmem:[#allocation5] sm:$0xff] %vm2238, %v2237
    // Predicated region
    $region38: #{mario_doom_state_embedding.1} parent=1 // pred_check
      _
    $region39: #{mario_doom_state_embedding.1} parent=1 // pred_check_branch
      %2241 = sbr.rel (0) target = $region41
    $region40: #{mario_doom_state_embedding.1} parent=1 // pred_region
      %s2243 = ssub.s32 128, 128
      %2244 = vsyncadd [#allocation6], %s2243
      %s2246 = sshll.u32 [#allocation5], 4
      %s2247 = int_to_ptr.vmem [resolvable:$true] %s2246
      %2249 = dma.vmem_to_hbm [thread:$0]  %s2247, 128, %s9, [#allocation6]
    $region41: #{mario_doom_state_embedding.1} parent=1 // pred_fallthru
      _
    // Predicated region
    $region42: #{mario_doom_state_embedding.1} parent=1 // pred_check
      _
    $region43: #{mario_doom_state_embedding.1} parent=1 // pred_check_branch
      %2251 = sbr.rel (0) target = $region45
    $region44: #{mario_doom_state_embedding.1} parent=1 // pred_region
      %2252 = dma.done [#allocation6], 128
    $region45: #{mario_doom_state_embedding.1} parent=1 // pred_fallthru
      _
    %2253 = vsyncpa [#allocation6], 1

</llo_original>
